<compile_context>
chip_gen: v6e
topology: v6e:2x2x1
jax: 0.10.0
libtpu: 0.0.40
codegen_flags: <defaults>
</compile_context>

<pallas_src>
import math
import functools

import jax
import jax.numpy as jnp
from jax import lax
from jax.experimental import pallas as pl
from jax.experimental.pallas import tpu as pltpu


# Matmul operand dtype. f32 keeps the PyTorch reference numerics; set to jnp.bfloat16 on
# v6e/v7x for ~2-3x MXU throughput (accumulation stays f32 via preferred_element_type).
_MM_DTYPE = jnp.float32


def _mm(a, b):
    """MXU matmul with f32 accumulation; operands optionally cast to _MM_DTYPE."""
    return jnp.dot(a.astype(_MM_DTYPE), b.astype(_MM_DTYPE),
                   preferred_element_type=jnp.float32)


def _mm_nt(a, b):
    """a @ b.T without materializing the transpose (contract last axes on the MXU)."""
    return lax.dot_general(a.astype(_MM_DTYPE), b.astype(_MM_DTYPE),
                           dimension_numbers=(((1,), (1,)), ((), ())),
                           preferred_element_type=jnp.float32)


# ----------------------------------------------------------------------------
# Fused decoder-layer kernel: one batch element per grid step.
# ----------------------------------------------------------------------------
def _fused_decoder_layer_kernel(t_ref, mem_ref, pos_ref,
                                wks_ref, bks_ref, wkc_ref, bkc_ref,
                                o_ref, *, num_imgs, hw, norm_scale, temp, eps_norm):
    t = t_ref[0].astype(jnp.float32)         # (L, D)   tgt (+ 0.001 * pos_embed)
    mem = mem_ref[0].astype(jnp.float32)     # (Lm, D)  memory
    p = pos_ref[0].astype(jnp.float32)       # (Lm, D)  pos
    wks = wks_ref[...].astype(jnp.float32)   # (D, Dk)  self-attn WK
    bks = bks_ref[...].astype(jnp.float32)   # (1, Dk)
    wkc = wkc_ref[...].astype(jnp.float32)   # (D, Dk)  cross-attn WK
    bkc = bkc_ref[...].astype(jnp.float32)   # (1, Dk)

    L, D = t.shape

    def l2norm(x):
        # F.normalize(p=2, dim=-1, eps=1e-12): x / max(||x||, 1e-12)
        ss = jnp.sum(x * x, axis=-1, keepdims=True)
        return x * lax.rsqrt(jnp.maximum(ss, 1e-24))

    def softmax_rows(scores):
        m = jnp.max(scores, axis=-1, keepdims=True)
        e = jnp.exp(scores - m)
        return e * pl.reciprocal(jnp.sum(e, axis=-1, keepdims=True), approx=True)

    def inst_norm(x):
        # InstanceL2Norm per (image, batch) group == groups of hw consecutive rows.
        x3 = x.reshape(num_imgs, hw, D)
        ss = jnp.sum(jnp.sum(x3 * x3, axis=-1, keepdims=True), axis=-2, keepdims=True)
        factor = (norm_scale * math.sqrt(float(hw * D))) * lax.rsqrt(ss + eps_norm)
        return (x3 * factor).reshape(L, D)

    # --- self attention: q = k = v = t, so project + normalize only once --------
    tp = l2norm(_mm(t, wks) + bks)                  # (L, Dk)
    attn_s = softmax_rows(_mm_nt(tp * temp, tp))    # (L, L); temp folded into q
    t = inst_norm(t + _mm(attn_s, t))               # residual + InstanceL2Norm

    # --- cross attention: both branches share q, k and WK -> one softmax --------
    qc = l2norm(_mm(t, wkc) + bkc) * temp           # (L, Dk)
    kc = l2norm(_mm(mem, wkc) + bkc)                # (Lm, Dk)
    attn_c = softmax_rows(_mm_nt(qc, kc))           # (L, Lm)

    mask = _mm(attn_c, p)                           # branch 1: value = pos
    tgt3 = _mm(attn_c, mem * p)                     # branch 2: value = memory * pos

    tgt2 = inst_norm(t * mask)                      # gated branch
    tgt4 = inst_norm(t + tgt3)                      # residual branch
    out = inst_norm(tgt2 + tgt4)

    o_ref[0] = out.astype(o_ref.dtype)


# ----------------------------------------------------------------------------
# Wrapper: PyTorch layouts in/out, one fused pallas_call.
# ----------------------------------------------------------------------------
def transformer_embed_decoder_layer(tgt, pos_embed, memory, pos, params, input_shape,
                                    temp=30.0):
    """Inputs in PyTorch layout: tgt/pos_embed (L, B, D), memory/pos (Lm, B, D)."""
    num_imgs, batch, dim, h, w = input_shape
    L, B, D = tgt.shape
    Lm = memory.shape[0]
    Dk = params["self_wk"].shape[1]
    hw = h * w
    assert L == num_imgs * hw
    norm_scale = math.sqrt(1.0 / (dim * 4 * 4))

    # with_pos_test_embed, then to batch-major (B, L, D) once for the fused kernel.
    t0 = tgt if pos_embed is None else tgt + pos_embed * 0.001
    t0 = jnp.transpose(t0, (1, 0, 2))
    mem = jnp.transpose(memory, (1, 0, 2))
    p = jnp.transpose(pos, (1, 0, 2))

    bks = params["self_bk"].reshape(1, Dk)
    bkc = params["cross_bk"].reshape(1, Dk)

    kern = functools.partial(_fused_decoder_layer_kernel, num_imgs=num_imgs, hw=hw,
                             norm_scale=norm_scale, temp=temp, eps_norm=1e-5)

    out = pl.pallas_call(
        kern,
        out_shape=jax.ShapeDtypeStruct((B, L, D), tgt.dtype),
        grid=(B,),
        in_specs=[
            pl.BlockSpec((1, L, D), lambda b: (b, 0, 0)),     # tgt (+pos_embed)
            pl.BlockSpec((1, Lm, D), lambda b: (b, 0, 0)),    # memory
            pl.BlockSpec((1, Lm, D), lambda b: (b, 0, 0)),    # pos
            pl.BlockSpec((D, Dk), lambda b: (0, 0)),          # self WK (stays resident)
            pl.BlockSpec((1, Dk), lambda b: (0, 0)),          # self bias
            pl.BlockSpec((D, Dk), lambda b: (0, 0)),          # cross WK
            pl.BlockSpec((1, Dk), lambda b: (0, 0)),          # cross bias
        ],
        out_specs=pl.BlockSpec((1, L, D), lambda b: (b, 0, 0)),
        compiler_params=pltpu.CompilerParams(dimension_semantics=("parallel",)),
    )(t0, mem, p, params["self_wk"], bks, params["cross_wk"], bkc)

    return jnp.transpose(out, (1, 0, 2))   # back to (L, B, D)


if __name__ == "__main__":
    num_imgs, batch, d_model, h, w = 2, 2, 32, 4, 4
    L = num_imgs * h * w          # target sequence length
    Lm = 16                       # memory sequence length
    key_feature_dim = 128         # fixed by the module (key_feature_dim=128)

    key = jax.random.PRNGKey(0)
    ks = jax.random.split(key, 6)
    tgt = jax.random.normal(ks[0], (L, batch, d_model), jnp.float32)
    pos_embed = jax.random.normal(ks[1], (L, batch, d_model), jnp.float32)
    memory = jax.random.normal(ks[2], (Lm, batch, d_model), jnp.float32)
    pos = jax.random.normal(ks[3], (Lm, batch, d_model), jnp.float32)

    # Deterministic parameter init mirroring RelationUnit: WK ~ N(0, sqrt(2/out)), bias 0.
    std = math.sqrt(2.0 / key_feature_dim)
    params = {
        "self_wk": jax.random.normal(ks[4], (d_model, key_feature_dim), jnp.float32) * std,
        "self_bk": jnp.zeros((key_feature_dim,), jnp.float32),
        "cross_wk": jax.random.normal(ks[5], (d_model, key_feature_dim), jnp.float32) * std,
        "cross_bk": jnp.zeros((key_feature_dim,), jnp.float32),
    }
    # TODO(synk): RelationUnit declares WV (Linear d_model->d_model) but never uses it in
    # forward, and the FFN argument is unused in the decoder's forward; both are omitted.

    input_shape = (num_imgs, batch, d_model, h, w)
    fwd = jax.jit(lambda a, b, c, d, prm: transformer_embed_decoder_layer(
        a, b, c, d, prm, input_shape))
    out = fwd(tgt, pos_embed, memory, pos, params)
    out = jax.block_until_ready(out)
    assert out.shape == (L, batch, d_model) and out.dtype == jnp.float32
    print("KERNEL_OK")
</pallas_src>

<mosaic_0001>
module attributes {stable_mosaic.version = 11 : i64} {
  func.func @_fused_decoder_layer_kernel(%arg0: i32, %arg1: memref<1x32x32xf32, #tpu.memory_space<vmem>>, %arg2: memref<1x16x32xf32, #tpu.memory_space<vmem>>, %arg3: memref<1x16x32xf32, #tpu.memory_space<vmem>>, %arg4: memref<32x128xf32, #tpu.memory_space<vmem>>, %arg5: memref<1x128xf32, #tpu.memory_space<vmem>>, %arg6: memref<32x128xf32, #tpu.memory_space<vmem>>, %arg7: memref<1x128xf32, #tpu.memory_space<vmem>>, %arg8: memref<1x32x32xf32, #tpu.memory_space<vmem>>) attributes {dimension_semantics = [#tpu.dimension_semantics<parallel>], iteration_bounds = array<i64: 2>, scalar_prefetch = 0 : i64, scratch_operands = 0 : i64, tpu.core_type = #tpu.core_type<tc>, window_params = [{transform_indices = @transform_0, window_bounds = array<i64: 1, 32, 32>}, {transform_indices = @transform_1, window_bounds = array<i64: 1, 16, 32>}, {transform_indices = @transform_2, window_bounds = array<i64: 1, 16, 32>}, {pipeline_mode = #tpu.pipeline_mode<synchronous>, transform_indices = @transform_3, window_bounds = array<i64: 32, 128>}, {pipeline_mode = #tpu.pipeline_mode<synchronous>, transform_indices = @transform_4, window_bounds = array<i64: 1, 128>}, {pipeline_mode = #tpu.pipeline_mode<synchronous>, transform_indices = @transform_5, window_bounds = array<i64: 32, 128>}, {pipeline_mode = #tpu.pipeline_mode<synchronous>, transform_indices = @transform_6, window_bounds = array<i64: 1, 128>}, {transform_indices = @transform_7, window_bounds = array<i64: 1, 32, 32>}]} {
    %c0 = arith.constant 0 : index
    %c0_0 = arith.constant 0 : index
    %c0_1 = arith.constant 0 : index
    %0 = vector.load %arg1[%c0, %c0_0, %c0_1] : memref<1x32x32xf32, #tpu.memory_space<vmem>>, vector<1x32x32xf32>
    %1 = vector.shape_cast %0 : vector<1x32x32xf32> to vector<32x32xf32>
    %c0_2 = arith.constant 0 : index
    %c0_3 = arith.constant 0 : index
    %c0_4 = arith.constant 0 : index
    %2 = vector.load %arg2[%c0_2, %c0_3, %c0_4] : memref<1x16x32xf32, #tpu.memory_space<vmem>>, vector<1x16x32xf32>
    %3 = vector.shape_cast %2 : vector<1x16x32xf32> to vector<16x32xf32>
    %c0_5 = arith.constant 0 : index
    %c0_6 = arith.constant 0 : index
    %c0_7 = arith.constant 0 : index
    %4 = vector.load %arg3[%c0_5, %c0_6, %c0_7] : memref<1x16x32xf32, #tpu.memory_space<vmem>>, vector<1x16x32xf32>
    %5 = vector.shape_cast %4 : vector<1x16x32xf32> to vector<16x32xf32>
    %c0_8 = arith.constant 0 : index
    %c0_9 = arith.constant 0 : index
    %6 = vector.load %arg4[%c0_8, %c0_9] : memref<32x128xf32, #tpu.memory_space<vmem>>, vector<32x128xf32>
    %c0_10 = arith.constant 0 : index
    %c0_11 = arith.constant 0 : index
    %7 = vector.load %arg5[%c0_10, %c0_11] : memref<1x128xf32, #tpu.memory_space<vmem>>, vector<1x128xf32>
    %c0_12 = arith.constant 0 : index
    %c0_13 = arith.constant 0 : index
    %8 = vector.load %arg6[%c0_12, %c0_13] : memref<32x128xf32, #tpu.memory_space<vmem>>, vector<32x128xf32>
    %c0_14 = arith.constant 0 : index
    %c0_15 = arith.constant 0 : index
    %9 = vector.load %arg7[%c0_14, %c0_15] : memref<1x128xf32, #tpu.memory_space<vmem>>, vector<1x128xf32>
    %cst = arith.constant dense<0.000000e+00> : vector<32x128xf32>
    %10 = tpu.matmul %1, %6, %cst {dimension_numbers = #tpu.dot_dimension_numbers<[1], [0], [0], [1], [0, 0, 1, 1], [], []>} : vector<32x32xf32>, vector<32x128xf32>, vector<32x128xf32> -> vector<32x128xf32>
    %11 = vector.broadcast %7 : vector<1x128xf32> to vector<32x128xf32>
    %12 = arith.addf %10, %11 : vector<32x128xf32>
    %13 = arith.mulf %12, %12 : vector<32x128xf32>
    %cst_16 = arith.constant dense<0.000000e+00> : vector<32xf32>
    %14 = vector.multi_reduction <add>, %13, %cst_16 [1] : vector<32x128xf32> to vector<32xf32>
    %15 = vector.shape_cast %14 : vector<32xf32> to vector<32x1xf32>
    %cst_17 = arith.constant 1.000000e-24 : f32
    %16 = vector.broadcast %cst_17 : f32 to vector<32x1xf32>
    %17 = arith.maximumf %15, %16 : vector<32x1xf32>
    %18 = math.rsqrt %17 : vector<32x1xf32>
    %19 = vector.broadcast %18 : vector<32x1xf32> to vector<32x128xf32>
    %20 = arith.mulf %12, %19 : vector<32x128xf32>
    %cst_18 = arith.constant 3.000000e+01 : f32
    %21 = vector.broadcast %cst_18 : f32 to vector<32x128xf32>
    %22 = arith.mulf %20, %21 : vector<32x128xf32>
    %cst_19 = arith.constant dense<0.000000e+00> : vector<32x32xf32>
    %23 = tpu.matmul %22, %20, %cst_19 {dimension_numbers = #tpu.dot_dimension_numbers<[1], [1], [0], [0], [0, 0, 1, 0], [], []>} : vector<32x128xf32>, vector<32x128xf32>, vector<32x32xf32> -> vector<32x32xf32>
    %cst_20 = arith.constant dense<0xFF800000> : vector<32xf32>
    %24 = vector.multi_reduction <maximumf>, %23, %cst_20 [1] : vector<32x32xf32> to vector<32xf32>
    %25 = vector.shape_cast %24 : vector<32xf32> to vector<32x1xf32>
    %26 = vector.broadcast %25 : vector<32x1xf32> to vector<32x32xf32>
    %27 = arith.subf %23, %26 : vector<32x32xf32>
    %28 = math.exp %27 : vector<32x32xf32>
    %cst_21 = arith.constant dense<0.000000e+00> : vector<32xf32>
    %29 = vector.multi_reduction <add>, %28, %cst_21 [1] : vector<32x32xf32> to vector<32xf32>
    %30 = vector.shape_cast %29 : vector<32xf32> to vector<32x1xf32>
    %31 = tpu.reciprocal %30 {approx = true} : vector<32x1xf32> -> vector<32x1xf32>
    %32 = vector.broadcast %31 : vector<32x1xf32> to vector<32x32xf32>
    %33 = arith.mulf %28, %32 : vector<32x32xf32>
    %cst_22 = arith.constant dense<0.000000e+00> : vector<32x32xf32>
    %34 = tpu.matmul %33, %1, %cst_22 {dimension_numbers = #tpu.dot_dimension_numbers<[1], [0], [0], [1], [0, 0, 1, 1], [], []>} : vector<32x32xf32>, vector<32x32xf32>, vector<32x32xf32> -> vector<32x32xf32>
    %35 = arith.addf %1, %34 : vector<32x32xf32>
    %36 = vector.shape_cast %35 : vector<32x32xf32> to vector<2x16x32xf32>
    %37 = arith.mulf %36, %36 : vector<2x16x32xf32>
    %cst_23 = arith.constant dense<0.000000e+00> : vector<2x16xf32>
    %38 = vector.multi_reduction <add>, %37, %cst_23 [2] : vector<2x16x32xf32> to vector<2x16xf32>
    %39 = vector.shape_cast %38 : vector<2x16xf32> to vector<2x16x1xf32>
    %cst_24 = arith.constant dense<0.000000e+00> : vector<2x1xf32>
    %40 = vector.multi_reduction <add>, %39, %cst_24 [1] : vector<2x16x1xf32> to vector<2x1xf32>
    %41 = vector.shape_cast %40 : vector<2x1xf32> to vector<2x1x1xf32>
    %cst_25 = arith.constant 9.99999974E-6 : f32
    %42 = vector.broadcast %cst_25 : f32 to vector<2x1x1xf32>
    %43 = arith.addf %41, %42 : vector<2x1x1xf32>
    %44 = math.rsqrt %43 : vector<2x1x1xf32>
    %cst_26 = arith.constant 1.000000e+00 : f32
    %45 = vector.broadcast %cst_26 : f32 to vector<2x1x1xf32>
    %46 = arith.mulf %45, %44 : vector<2x1x1xf32>
    %47 = vector.broadcast %46 : vector<2x1x1xf32> to vector<2x16x32xf32>
    %48 = arith.mulf %36, %47 : vector<2x16x32xf32>
    %49 = vector.shape_cast %48 : vector<2x16x32xf32> to vector<32x32xf32>
    %cst_27 = arith.constant dense<0.000000e+00> : vector<32x128xf32>
    %50 = tpu.matmul %49, %8, %cst_27 {dimension_numbers = #tpu.dot_dimension_numbers<[1], [0], [0], [1], [0, 0, 1, 1], [], []>} : vector<32x32xf32>, vector<32x128xf32>, vector<32x128xf32> -> vector<32x128xf32>
    %51 = vector.broadcast %9 : vector<1x128xf32> to vector<32x128xf32>
    %52 = arith.addf %50, %51 : vector<32x128xf32>
    %53 = arith.mulf %52, %52 : vector<32x128xf32>
    %cst_28 = arith.constant dense<0.000000e+00> : vector<32xf32>
    %54 = vector.multi_reduction <add>, %53, %cst_28 [1] : vector<32x128xf32> to vector<32xf32>
    %55 = vector.shape_cast %54 : vector<32xf32> to vector<32x1xf32>
    %cst_29 = arith.constant 1.000000e-24 : f32
    %56 = vector.broadcast %cst_29 : f32 to vector<32x1xf32>
    %57 = arith.maximumf %55, %56 : vector<32x1xf32>
    %58 = math.rsqrt %57 : vector<32x1xf32>
    %59 = vector.broadcast %58 : vector<32x1xf32> to vector<32x128xf32>
    %60 = arith.mulf %52, %59 : vector<32x128xf32>
    %cst_30 = arith.constant 3.000000e+01 : f32
    %61 = vector.broadcast %cst_30 : f32 to vector<32x128xf32>
    %62 = arith.mulf %60, %61 : vector<32x128xf32>
    %cst_31 = arith.constant dense<0.000000e+00> : vector<16x128xf32>
    %63 = tpu.matmul %3, %8, %cst_31 {dimension_numbers = #tpu.dot_dimension_numbers<[1], [0], [0], [1], [0, 0, 1, 1], [], []>} : vector<16x32xf32>, vector<32x128xf32>, vector<16x128xf32> -> vector<16x128xf32>
    %64 = vector.broadcast %9 : vector<1x128xf32> to vector<16x128xf32>
    %65 = arith.addf %63, %64 : vector<16x128xf32>
    %66 = arith.mulf %65, %65 : vector<16x128xf32>
    %cst_32 = arith.constant dense<0.000000e+00> : vector<16xf32>
    %67 = vector.multi_reduction <add>, %66, %cst_32 [1] : vector<16x128xf32> to vector<16xf32>
    %68 = vector.shape_cast %67 : vector<16xf32> to vector<16x1xf32>
    %cst_33 = arith.constant 1.000000e-24 : f32
    %69 = vector.broadcast %cst_33 : f32 to vector<16x1xf32>
    %70 = arith.maximumf %68, %69 : vector<16x1xf32>
    %71 = math.rsqrt %70 : vector<16x1xf32>
    %72 = vector.broadcast %71 : vector<16x1xf32> to vector<16x128xf32>
    %73 = arith.mulf %65, %72 : vector<16x128xf32>
    %cst_34 = arith.constant dense<0.000000e+00> : vector<32x16xf32>
    %74 = tpu.matmul %62, %73, %cst_34 {dimension_numbers = #tpu.dot_dimension_numbers<[1], [1], [0], [0], [0, 0, 1, 0], [], []>} : vector<32x128xf32>, vector<16x128xf32>, vector<32x16xf32> -> vector<32x16xf32>
    %cst_35 = arith.constant dense<0xFF800000> : vector<32xf32>
    %75 = vector.multi_reduction <maximumf>, %74, %cst_35 [1] : vector<32x16xf32> to vector<32xf32>
    %76 = vector.shape_cast %75 : vector<32xf32> to vector<32x1xf32>
    %77 = vector.broadcast %76 : vector<32x1xf32> to vector<32x16xf32>
    %78 = arith.subf %74, %77 : vector<32x16xf32>
    %79 = math.exp %78 : vector<32x16xf32>
    %cst_36 = arith.constant dense<0.000000e+00> : vector<32xf32>
    %80 = vector.multi_reduction <add>, %79, %cst_36 [1] : vector<32x16xf32> to vector<32xf32>
    %81 = vector.shape_cast %80 : vector<32xf32> to vector<32x1xf32>
    %82 = tpu.reciprocal %81 {approx = true} : vector<32x1xf32> -> vector<32x1xf32>
    %83 = vector.broadcast %82 : vector<32x1xf32> to vector<32x16xf32>
    %84 = arith.mulf %79, %83 : vector<32x16xf32>
    %cst_37 = arith.constant dense<0.000000e+00> : vector<32x32xf32>
    %85 = tpu.matmul %84, %5, %cst_37 {dimension_numbers = #tpu.dot_dimension_numbers<[1], [0], [0], [1], [0, 0, 1, 1], [], []>} : vector<32x16xf32>, vector<16x32xf32>, vector<32x32xf32> -> vector<32x32xf32>
    %86 = arith.mulf %3, %5 : vector<16x32xf32>
    %cst_38 = arith.constant dense<0.000000e+00> : vector<32x32xf32>
    %87 = tpu.matmul %84, %86, %cst_38 {dimension_numbers = #tpu.dot_dimension_numbers<[1], [0], [0], [1], [0, 0, 1, 1], [], []>} : vector<32x16xf32>, vector<16x32xf32>, vector<32x32xf32> -> vector<32x32xf32>
    %88 = arith.mulf %49, %85 : vector<32x32xf32>
    %89 = vector.shape_cast %88 : vector<32x32xf32> to vector<2x16x32xf32>
    %90 = arith.mulf %89, %89 : vector<2x16x32xf32>
    %cst_39 = arith.constant dense<0.000000e+00> : vector<2x16xf32>
    %91 = vector.multi_reduction <add>, %90, %cst_39 [2] : vector<2x16x32xf32> to vector<2x16xf32>
    %92 = vector.shape_cast %91 : vector<2x16xf32> to vector<2x16x1xf32>
    %cst_40 = arith.constant dense<0.000000e+00> : vector<2x1xf32>
    %93 = vector.multi_reduction <add>, %92, %cst_40 [1] : vector<2x16x1xf32> to vector<2x1xf32>
    %94 = vector.shape_cast %93 : vector<2x1xf32> to vector<2x1x1xf32>
    %cst_41 = arith.constant 9.99999974E-6 : f32
    %95 = vector.broadcast %cst_41 : f32 to vector<2x1x1xf32>
    %96 = arith.addf %94, %95 : vector<2x1x1xf32>
    %97 = math.rsqrt %96 : vector<2x1x1xf32>
    %cst_42 = arith.constant 1.000000e+00 : f32
    %98 = vector.broadcast %cst_42 : f32 to vector<2x1x1xf32>
    %99 = arith.mulf %98, %97 : vector<2x1x1xf32>
    %100 = vector.broadcast %99 : vector<2x1x1xf32> to vector<2x16x32xf32>
    %101 = arith.mulf %89, %100 : vector<2x16x32xf32>
    %102 = vector.shape_cast %101 : vector<2x16x32xf32> to vector<32x32xf32>
    %103 = arith.addf %49, %87 : vector<32x32xf32>
    %104 = vector.shape_cast %103 : vector<32x32xf32> to vector<2x16x32xf32>
    %105 = arith.mulf %104, %104 : vector<2x16x32xf32>
    %cst_43 = arith.constant dense<0.000000e+00> : vector<2x16xf32>
    %106 = vector.multi_reduction <add>, %105, %cst_43 [2] : vector<2x16x32xf32> to vector<2x16xf32>
    %107 = vector.shape_cast %106 : vector<2x16xf32> to vector<2x16x1xf32>
    %cst_44 = arith.constant dense<0.000000e+00> : vector<2x1xf32>
    %108 = vector.multi_reduction <add>, %107, %cst_44 [1] : vector<2x16x1xf32> to vector<2x1xf32>
    %109 = vector.shape_cast %108 : vector<2x1xf32> to vector<2x1x1xf32>
    %cst_45 = arith.constant 9.99999974E-6 : f32
    %110 = vector.broadcast %cst_45 : f32 to vector<2x1x1xf32>
    %111 = arith.addf %109, %110 : vector<2x1x1xf32>
    %112 = math.rsqrt %111 : vector<2x1x1xf32>
    %cst_46 = arith.constant 1.000000e+00 : f32
    %113 = vector.broadcast %cst_46 : f32 to vector<2x1x1xf32>
    %114 = arith.mulf %113, %112 : vector<2x1x1xf32>
    %115 = vector.broadcast %114 : vector<2x1x1xf32> to vector<2x16x32xf32>
    %116 = arith.mulf %104, %115 : vector<2x16x32xf32>
    %117 = vector.shape_cast %116 : vector<2x16x32xf32> to vector<32x32xf32>
    %118 = arith.addf %102, %117 : vector<32x32xf32>
    %119 = vector.shape_cast %118 : vector<32x32xf32> to vector<2x16x32xf32>
    %120 = arith.mulf %119, %119 : vector<2x16x32xf32>
    %cst_47 = arith.constant dense<0.000000e+00> : vector<2x16xf32>
    %121 = vector.multi_reduction <add>, %120, %cst_47 [2] : vector<2x16x32xf32> to vector<2x16xf32>
    %122 = vector.shape_cast %121 : vector<2x16xf32> to vector<2x16x1xf32>
    %cst_48 = arith.constant dense<0.000000e+00> : vector<2x1xf32>
    %123 = vector.multi_reduction <add>, %122, %cst_48 [1] : vector<2x16x1xf32> to vector<2x1xf32>
    %124 = vector.shape_cast %123 : vector<2x1xf32> to vector<2x1x1xf32>
    %cst_49 = arith.constant 9.99999974E-6 : f32
    %125 = vector.broadcast %cst_49 : f32 to vector<2x1x1xf32>
    %126 = arith.addf %124, %125 : vector<2x1x1xf32>
    %127 = math.rsqrt %126 : vector<2x1x1xf32>
    %cst_50 = arith.constant 1.000000e+00 : f32
    %128 = vector.broadcast %cst_50 : f32 to vector<2x1x1xf32>
    %129 = arith.mulf %128, %127 : vector<2x1x1xf32>
    %130 = vector.broadcast %129 : vector<2x1x1xf32> to vector<2x16x32xf32>
    %131 = arith.mulf %119, %130 : vector<2x16x32xf32>
    %132 = vector.shape_cast %131 : vector<2x16x32xf32> to vector<32x32xf32>
    %c0_51 = arith.constant 0 : index
    %c0_52 = arith.constant 0 : index
    %c0_53 = arith.constant 0 : index
    %133 = vector.load %arg8[%c0_51, %c0_52, %c0_53] : memref<1x32x32xf32, #tpu.memory_space<vmem>>, vector<1x32x32xf32>
    %134 = vector.shape_cast %133 : vector<1x32x32xf32> to vector<32x32xf32>
    %135 = vector.shape_cast %132 : vector<32x32xf32> to vector<1x32x32xf32>
    tpu.vector_store %arg8[%c0_51, %c0_52, %c0_53], %135 {strides = array<i32>} : memref<1x32x32xf32, #tpu.memory_space<vmem>>, vector<1x32x32xf32>,
    return
  }
  func.func @transform_0(%arg0: i32) -> (i32, i32, i32) {
    %c0_i32 = arith.constant 0 : i32
    %c0_i32_0 = arith.constant 0 : i32
    %c0_i32_1 = arith.constant 0 : i32
    return %arg0, %c0_i32, %c0_i32_0 : i32, i32, i32
  }
  func.func @transform_1(%arg0: i32) -> (i32, i32, i32) {
    %c0_i32 = arith.constant 0 : i32
    %c0_i32_0 = arith.constant 0 : i32
    %c0_i32_1 = arith.constant 0 : i32
    return %arg0, %c0_i32, %c0_i32_0 : i32, i32, i32
  }
  func.func @transform_2(%arg0: i32) -> (i32, i32, i32) {
    %c0_i32 = arith.constant 0 : i32
    %c0_i32_0 = arith.constant 0 : i32
    %c0_i32_1 = arith.constant 0 : i32
    return %arg0, %c0_i32, %c0_i32_0 : i32, i32, i32
  }
  func.func @transform_3(%arg0: i32) -> (i32, i32) {
    %c0_i32 = arith.constant 0 : i32
    %c0_i32_0 = arith.constant 0 : i32
    %c0_i32_1 = arith.constant 0 : i32
    return %c0_i32, %c0_i32_0 : i32, i32
  }
  func.func @transform_4(%arg0: i32) -> (i32, i32) {
    %c0_i32 = arith.constant 0 : i32
    %c0_i32_0 = arith.constant 0 : i32
    %c0_i32_1 = arith.constant 0 : i32
    return %c0_i32, %c0_i32_0 : i32, i32
  }
  func.func @transform_5(%arg0: i32) -> (i32, i32) {
    %c0_i32 = arith.constant 0 : i32
    %c0_i32_0 = arith.constant 0 : i32
    %c0_i32_1 = arith.constant 0 : i32
    return %c0_i32, %c0_i32_0 : i32, i32
  }
  func.func @transform_6(%arg0: i32) -> (i32, i32) {
    %c0_i32 = arith.constant 0 : i32
    %c0_i32_0 = arith.constant 0 : i32
    %c0_i32_1 = arith.constant 0 : i32
    return %c0_i32, %c0_i32_0 : i32, i32
  }
  func.func @transform_7(%arg0: i32) -> (i32, i32, i32) {
    %c0_i32 = arith.constant 0 : i32
    %c0_i32_0 = arith.constant 0 : i32
    %c0_i32_1 = arith.constant 0 : i32
    return %arg0, %c0_i32, %c0_i32_0 : i32, i32, i32
  }
}

</mosaic_0001>

<llo_original>
// kernel: _lambda_.1
$region0: #{_lambda_.1}
  #allocation0 [shape = 'u32[]', space=smem, size = 0x4, offset = 0x4, fixed_abs, tag = 'smem constant byte address 0x4 - core index']
  #allocation1 [shape = 'u32[144,128]{1,0:T(1,128)}', space=vmem, size = 0x12000, scoped, tag = 'internal scratch']
  %s0 = inlined_call_operand.vmem [shape: f32[2,32,32], index: 0, kind: input, shape index: {}]
  %s1 = inlined_call_operand.vmem [shape: f32[2,16,32], index: 1, kind: input, shape index: {}]
  %s2 = inlined_call_operand.vmem [shape: f32[2,16,32], index: 2, kind: input, shape index: {}]
  %s3 = inlined_call_operand.vmem [shape: f32[32,128], index: 3, kind: input, shape index: {}]
  %s4 = inlined_call_operand.vmem [shape: f32[1,128], index: 4, kind: input, shape index: {}]
  %s5 = inlined_call_operand.vmem [shape: f32[32,128], index: 5, kind: input, shape index: {}]
  %s6 = inlined_call_operand.vmem [shape: f32[1,128], index: 6, kind: input, shape index: {}]
  %s7 = inlined_call_operand.vmem [shape: f32[2,32,32], index: 7, kind: output, shape index: {}]
  %s8 = sld [smem:[#allocation0]]
  $region61: #{_lambda_.1} parent=0
    _
  %s10 = ssub.s32 1, %s8
  %s11 = scalar_select 0, %s10, %s8
  loop: start=0, step=1, limit=4
  $region2: #{_lambda_.1} parent=0 // loop_pre_header
    _
  $region3: #{_lambda_.1} parent=0 // loop_header
    %s13 = sphi 0, %s17
    %p14 = scmp.ge.s32.totalorder %s13, 4
    %s23 = sphi 0, %s25
    %s26 = sphi 0, %s23
    %s27 = sphi 0, %s26
    %s43 = sphi 0, %s27
    %s49 = sphi 0, %s51
    %s52 = sphi 0, %s49
    %s53 = sphi 0, %s52
    %s69 = sphi 0, %s53
    %s75 = sphi 0, %s77
    %s78 = sphi 0, %s75
    %s79 = sphi 0, %s78
    %s95 = sphi 0, %s79
    %s99 = sphi 0, %s99
    %s101 = sphi 0, %s99
    %s102 = sphi 0, %s101
    %s116 = sphi 0, %s102
    %s120 = sphi 0, %s120
    %s122 = sphi 0, %s120
    %s123 = sphi 0, %s122
    %s137 = sphi 0, %s123
    %s141 = sphi 0, %s141
    %s143 = sphi 0, %s141
    %s144 = sphi 0, %s143
    %s158 = sphi 0, %s144
    %s162 = sphi 0, %s162
    %s164 = sphi 0, %s162
    %s165 = sphi 0, %s164
    %s179 = sphi 0, %s165
    %s185 = sphi 0, %s187
    %s188 = sphi 0, %s185
    %s189 = sphi 0, %s188
    %s205 = sphi 0, %s189
  $region4: #{_lambda_.1} parent=0 // loop_header_branch
    %16 = sbr.rel (%p14) target = $region8
  $region5: #{_lambda_.1} parent=0 // loop_body
    %s18 = ssub.s32 %s13, 1
    %s19 = ssub.s32 %s13, 2
    %s20 = sadd.s32 %s13, 1
    %s21 = ssub.s32 %s13, %s20
    %p22 = scmp.eq.s32.totalorder %s21, 0
    %s24 = sadd.s32 %s23, 1
    %s25 = scalar_select %p22, %s23, %s24
    %p28 = pneg %p22
    %p29 = scmp.eq.s32.totalorder %s13, 1
    %p30 = por %p28, %p29
    %p31 = scmp.ne.s32.totalorder %s23, %s26
    %p32 = scmp.eq.s32.totalorder %s13, 0
    %p33 = por %p31, %p32
    %p34 = scmp.ne.s32.totalorder %s23, %s26
    %p35 = scmp.eq.s32.totalorder %s18, 1
    %p36 = por %p34, %p35
    %p37 = scmp.ne.s32.totalorder %s26, %s27
    %p38 = scmp.eq.s32.totalorder %s18, 0
    %p39 = por %p37, %p38
    %p40 = scmp.ne.s32.totalorder %s26, %s27
    %p41 = scmp.eq.s32.totalorder %s19, 1
    %p42 = por %p40, %p41
    %p44 = scmp.ne.s32.totalorder %s27, %s43
    %p45 = scmp.eq.s32.totalorder %s19, 0
    %p46 = por %p44, %p45
    %s47 = ssub.s32 %s13, %s20
    %p48 = scmp.eq.s32.totalorder %s47, 0
    %s50 = sadd.s32 %s49, 1
    %s51 = scalar_select %p48, %s49, %s50
    %p54 = pneg %p48
    %p55 = scmp.eq.s32.totalorder %s13, 1
    %p56 = por %p54, %p55
    %p57 = scmp.ne.s32.totalorder %s49, %s52
    %p58 = scmp.eq.s32.totalorder %s13, 0
    %p59 = por %p57, %p58
    %p60 = scmp.ne.s32.totalorder %s49, %s52
    %p61 = scmp.eq.s32.totalorder %s18, 1
    %p62 = por %p60, %p61
    %p63 = scmp.ne.s32.totalorder %s52, %s53
    %p64 = scmp.eq.s32.totalorder %s18, 0
    %p65 = por %p63, %p64
    %p66 = scmp.ne.s32.totalorder %s52, %s53
    %p67 = scmp.eq.s32.totalorder %s19, 1
    %p68 = por %p66, %p67
    %p70 = scmp.ne.s32.totalorder %s53, %s69
    %p71 = scmp.eq.s32.totalorder %s19, 0
    %p72 = por %p70, %p71
    %s73 = ssub.s32 %s13, %s20
    %p74 = scmp.eq.s32.totalorder %s73, 0
    %s76 = sadd.s32 %s75, 1
    %s77 = scalar_select %p74, %s75, %s76
    %p80 = pneg %p74
    %p81 = scmp.eq.s32.totalorder %s13, 1
    %p82 = por %p80, %p81
    %p83 = scmp.ne.s32.totalorder %s75, %s78
    %p84 = scmp.eq.s32.totalorder %s13, 0
    %p85 = por %p83, %p84
    %p86 = scmp.ne.s32.totalorder %s75, %s78
    %p87 = scmp.eq.s32.totalorder %s18, 1
    %p88 = por %p86, %p87
    %p89 = scmp.ne.s32.totalorder %s78, %s79
    %p90 = scmp.eq.s32.totalorder %s18, 0
    %p91 = por %p89, %p90
    %p92 = scmp.ne.s32.totalorder %s78, %s79
    %p93 = scmp.eq.s32.totalorder %s19, 1
    %p94 = por %p92, %p93
    %p96 = scmp.ne.s32.totalorder %s79, %s95
    %p97 = scmp.eq.s32.totalorder %s19, 0
    %p98 = por %p96, %p97
    %s100 = sadd.s32 %s99, 1
    %p103 = scmp.eq.s32.totalorder %s13, 1
    %p104 = scmp.ne.s32.totalorder %s99, %s101
    %p105 = scmp.eq.s32.totalorder %s13, 0
    %p106 = por %p104, %p105
    %p107 = scmp.ne.s32.totalorder %s99, %s101
    %p108 = scmp.eq.s32.totalorder %s18, 1
    %p109 = por %p107, %p108
    %p110 = scmp.ne.s32.totalorder %s101, %s102
    %p111 = scmp.eq.s32.totalorder %s18, 0
    %p112 = por %p110, %p111
    %p113 = scmp.ne.s32.totalorder %s101, %s102
    %p114 = scmp.eq.s32.totalorder %s19, 1
    %p115 = por %p113, %p114
    %p117 = scmp.ne.s32.totalorder %s102, %s116
    %p118 = scmp.eq.s32.totalorder %s19, 0
    %p119 = por %p117, %p118
    %s121 = sadd.s32 %s120, 1
    %p124 = scmp.eq.s32.totalorder %s13, 1
    %p125 = scmp.ne.s32.totalorder %s120, %s122
    %p126 = scmp.eq.s32.totalorder %s13, 0
    %p127 = por %p125, %p126
    %p128 = scmp.ne.s32.totalorder %s120, %s122
    %p129 = scmp.eq.s32.totalorder %s18, 1
    %p130 = por %p128, %p129
    %p131 = scmp.ne.s32.totalorder %s122, %s123
    %p132 = scmp.eq.s32.totalorder %s18, 0
    %p133 = por %p131, %p132
    %p134 = scmp.ne.s32.totalorder %s122, %s123
    %p135 = scmp.eq.s32.totalorder %s19, 1
    %p136 = por %p134, %p135
    %p138 = scmp.ne.s32.totalorder %s123, %s137
    %p139 = scmp.eq.s32.totalorder %s19, 0
    %p140 = por %p138, %p139
    %s142 = sadd.s32 %s141, 1
    %p145 = scmp.eq.s32.totalorder %s13, 1
    %p146 = scmp.ne.s32.totalorder %s141, %s143
    %p147 = scmp.eq.s32.totalorder %s13, 0
    %p148 = por %p146, %p147
    %p149 = scmp.ne.s32.totalorder %s141, %s143
    %p150 = scmp.eq.s32.totalorder %s18, 1
    %p151 = por %p149, %p150
    %p152 = scmp.ne.s32.totalorder %s143, %s144
    %p153 = scmp.eq.s32.totalorder %s18, 0
    %p154 = por %p152, %p153
    %p155 = scmp.ne.s32.totalorder %s143, %s144
    %p156 = scmp.eq.s32.totalorder %s19, 1
    %p157 = por %p155, %p156
    %p159 = scmp.ne.s32.totalorder %s144, %s158
    %p160 = scmp.eq.s32.totalorder %s19, 0
    %p161 = por %p159, %p160
    %s163 = sadd.s32 %s162, 1
    %p166 = scmp.eq.s32.totalorder %s13, 1
    %p167 = scmp.ne.s32.totalorder %s162, %s164
    %p168 = scmp.eq.s32.totalorder %s13, 0
    %p169 = por %p167, %p168
    %p170 = scmp.ne.s32.totalorder %s162, %s164
    %p171 = scmp.eq.s32.totalorder %s18, 1
    %p172 = por %p170, %p171
    %p173 = scmp.ne.s32.totalorder %s164, %s165
    %p174 = scmp.eq.s32.totalorder %s18, 0
    %p175 = por %p173, %p174
    %p176 = scmp.ne.s32.totalorder %s164, %s165
    %p177 = scmp.eq.s32.totalorder %s19, 1
    %p178 = por %p176, %p177
    %p180 = scmp.ne.s32.totalorder %s165, %s179
    %p181 = scmp.eq.s32.totalorder %s19, 0
    %p182 = por %p180, %p181
    %s183 = ssub.s32 %s13, %s20
    %p184 = scmp.eq.s32.totalorder %s183, 0
    %s186 = sadd.s32 %s185, 1
    %s187 = scalar_select %p184, %s185, %s186
    %p190 = pneg %p184
    %p191 = scmp.eq.s32.totalorder %s13, 1
    %p192 = por %p190, %p191
    %p193 = scmp.ne.s32.totalorder %s185, %s188
    %p194 = scmp.eq.s32.totalorder %s13, 0
    %p195 = por %p193, %p194
    %p196 = scmp.ne.s32.totalorder %s185, %s188
    %p197 = scmp.eq.s32.totalorder %s18, 1
    %p198 = por %p196, %p197
    %p199 = scmp.ne.s32.totalorder %s188, %s189
    %p200 = scmp.eq.s32.totalorder %s18, 0
    %p201 = por %p199, %p200
    %p202 = scmp.ne.s32.totalorder %s188, %s189
    %p203 = scmp.eq.s32.totalorder %s19, 1
    %p204 = por %p202, %p203
    %p206 = scmp.ne.s32.totalorder %s189, %s205
    %p207 = scmp.eq.s32.totalorder %s19, 0
    %p208 = por %p206, %p207
    %p209 = scmp.le.s32.totalorder 1, %s13
    %p210 = scmp.lt.s32.totalorder %s13, 3
    %p211 = pnand %p209, %p210
    %p212 = pneg %p211
    // Predicated region
    $region9: #{_lambda_.1} parent=5 // pred_check
      _
    $region10: #{_lambda_.1} parent=5 // pred_check_branch
      %214 = sbr.rel (%p211) target = $region12
    $region11: #{_lambda_.1} parent=5 // pred_region
      %s215 = ssub.s32 %s13, 1
      // Predicated region
      $region13: #{_lambda_.1} parent=11 // pred_check
        %p216 = pneg %p112
      $region14: #{_lambda_.1} parent=11 // pred_check_branch
        %218 = sbr.rel (%p216) target = $region16
      $region15: #{_lambda_.1} parent=11 // pred_region
        _
      $region16: #{_lambda_.1} parent=11 // pred_fallthru
        _
      // Predicated region
      $region17: #{_lambda_.1} parent=11 // pred_check
        %p219 = pneg %p133
      $region18: #{_lambda_.1} parent=11 // pred_check_branch
        %221 = sbr.rel (%p219) target = $region20
      $region19: #{_lambda_.1} parent=11 // pred_region
        _
      $region20: #{_lambda_.1} parent=11 // pred_fallthru
        _
      // Predicated region
      $region21: #{_lambda_.1} parent=11 // pred_check
        %p222 = pneg %p154
      $region22: #{_lambda_.1} parent=11 // pred_check_branch
        %224 = sbr.rel (%p222) target = $region24
      $region23: #{_lambda_.1} parent=11 // pred_region
        _
      $region24: #{_lambda_.1} parent=11 // pred_fallthru
        _
      // Predicated region
      $region25: #{_lambda_.1} parent=11 // pred_check
        %p225 = pneg %p175
      $region26: #{_lambda_.1} parent=11 // pred_check_branch
        %227 = sbr.rel (%p225) target = $region28
      $region27: #{_lambda_.1} parent=11 // pred_region
        _
      $region28: #{_lambda_.1} parent=11 // pred_fallthru
        _
    $region12: #{_lambda_.1} parent=5 // pred_fallthru
      _
    %p228 = scmp.lt.s32.totalorder %s13, 2
    // Predicated region
    $region29: #{_lambda_.1} parent=5 // pred_check
      %p229 = pneg %p228
    $region30: #{_lambda_.1} parent=5 // pred_check_branch
      %231 = sbr.rel (%p229) target = $region32
    $region31: #{_lambda_.1} parent=5 // pred_region
      // Predicated region
      $region33: #{_lambda_.1} parent=31 // pred_check
        %p232 = pneg %p33
      $region34: #{_lambda_.1} parent=31 // pred_check_branch
        %234 = sbr.rel (%p232) target = $region36
      $region35: #{_lambda_.1} parent=31 // pred_region
        %p235 = scmp.lt.s32.totalorder %s13, 1
        %s236 = scalar_select %p235, %s13, 1
        %s237 = smul.addr %s236, 4
        %s238 = smul.addr %s237, 8
        %s239 = scalar_lea.vmem %s0, %s238
      $region36: #{_lambda_.1} parent=31 // pred_fallthru
        _
      // Predicated region
      $region37: #{_lambda_.1} parent=31 // pred_check
        %p240 = pneg %p59
      $region38: #{_lambda_.1} parent=31 // pred_check_branch
        %242 = sbr.rel (%p240) target = $region40
      $region39: #{_lambda_.1} parent=31 // pred_region
        %p243 = scmp.lt.s32.totalorder %s13, 1
        %s244 = scalar_select %p243, %s13, 1
        %s245 = smul.addr %s244, 2
        %s246 = smul.addr %s245, 8
        %s247 = scalar_lea.vmem %s1, %s246
      $region40: #{_lambda_.1} parent=31 // pred_fallthru
        _
      // Predicated region
      $region41: #{_lambda_.1} parent=31 // pred_check
        %p248 = pneg %p85
      $region42: #{_lambda_.1} parent=31 // pred_check_branch
        %250 = sbr.rel (%p248) target = $region44
      $region43: #{_lambda_.1} parent=31 // pred_region
        %p251 = scmp.lt.s32.totalorder %s13, 1
        %s252 = scalar_select %p251, %s13, 1
        %s253 = smul.addr %s252, 2
        %s254 = smul.addr %s253, 8
        %s255 = scalar_lea.vmem %s2, %s254
      $region44: #{_lambda_.1} parent=31 // pred_fallthru
        _
    $region32: #{_lambda_.1} parent=5 // pred_fallthru
      _
    %p256 = scmp.le.s32.totalorder 1, %s13
    %p257 = scmp.lt.s32.totalorder %s13, 3
    %p258 = pnand %p256, %p257
    %p259 = pneg %p258
    // Predicated region
    $region45: #{_lambda_.1} parent=5 // pred_check
      _
    $region46: #{_lambda_.1} parent=5 // pred_check_branch
      %261 = sbr.rel (%p258) target = $region48
    $region47: #{_lambda_.1} parent=5 // pred_region
      %s262 = ssub.s32 %s13, 1
      %p263 = scmp.lt.s32.totalorder %s18, 1
      %s264 = scalar_select %p263, %s18, 1
      %s265 = smul.addr %s264, 4
      %s266 = smul.addr %s265, 8
      %s267 = scalar_lea.vmem %s0, %s266
      %p268 = pneg %p39
      %p269 = pneg %p36
      %p270 = scmp.lt.s32.totalorder %s18, 1
      %s271 = scalar_select %p270, %s18, 1
      %s272 = smul.addr %s271, 2
      %s273 = smul.addr %s272, 8
      %s274 = scalar_lea.vmem %s1, %s273
      %p275 = pneg %p65
      %p276 = pneg %p62
      %p277 = scmp.lt.s32.totalorder %s18, 1
      %s278 = scalar_select %p277, %s18, 1
      %s279 = smul.addr %s278, 2
      %s280 = smul.addr %s279, 8
      %s281 = scalar_lea.vmem %s2, %s280
      %p282 = pneg %p91
      %p283 = pneg %p88
      %p284 = pneg %p112
      %p285 = pneg %p109
      %p286 = pneg %p133
      %p287 = pneg %p130
      %p288 = pneg %p154
      %p289 = pneg %p151
      %p290 = pneg %p175
      %p291 = pneg %p172
      %p292 = pneg %p201
      %p293 = pneg %p198
      %p294 = scmp.lt.s32.totalorder %s18, 1
      %s295 = scalar_select %p294, %s18, 1
      %s296 = smul.addr %s295, 4
      %s297 = smul.addr %s296, 8
      %s298 = scalar_lea.vmem %s7, %s297
      %p299 = scmp.lt.s32.totalorder %s18, 1
      %s300 = scalar_select %p299, %s18, 1
      %s301 = smul.addr %s300, 4
      %s302 = smul.addr %s301, 8
      %s303 = scalar_lea.vmem %s0, %s302
      %p304 = scmp.lt.s32.totalorder %s18, 1
      %s305 = scalar_select %p304, %s18, 1
      %s306 = smul.addr %s305, 2
      %s307 = smul.addr %s306, 8
      %s308 = scalar_lea.vmem %s1, %s307
      %p309 = scmp.lt.s32.totalorder %s18, 1
      %s310 = scalar_select %p309, %s18, 1
      %s311 = smul.addr %s310, 2
      %s312 = smul.addr %s311, 8
      %s313 = scalar_lea.vmem %s2, %s312
      %p314 = scmp.lt.s32.totalorder %s18, 1
      %s315 = scalar_select %p314, %s18, 1
      %s316 = smul.addr %s315, 4
      %s317 = smul.addr %s316, 8
      %s318 = scalar_lea.vmem %s7, %s317
      %v319 = vld [vmem:[%s303] sm:$0xff]
      %v320 = vld [vmem:[%s303 + $0x8] sm:$0xff]
      %v321 = vld [vmem:[%s303 + $0x10] sm:$0xff]
      %v322 = vld [vmem:[%s303 + $0x18] sm:$0xff]
      %v323 = vld [vmem:[%s308] sm:$0xff]
      %v324 = vld [vmem:[%s308 + $0x8] sm:$0xff]
      %v325 = vld [vmem:[%s313] sm:$0xff]
      %v326 = vld [vmem:[%s313 + $0x8] sm:$0xff]
      %v327 = vld [vmem:[%s3] sm:$0xff]
      %v328 = vld [vmem:[%s3 + $0x8] sm:$0xff]
      %v329 = vld [vmem:[%s3 + $0x10] sm:$0xff]
      %v330 = vld [vmem:[%s3 + $0x18] sm:$0xff]
      %v331 = vld [vmem:[%s4] sm:$0x1]
      %v332 = vld [vmem:[%s5] sm:$0xff]
      %v333 = vld [vmem:[%s5 + $0x8] sm:$0xff]
      %v334 = vld [vmem:[%s5 + $0x10] sm:$0xff]
      %v335 = vld [vmem:[%s5 + $0x18] sm:$0xff]
      %v336 = vld [vmem:[%s6] sm:$0x1]
      %v338 = vlaneseq
      %v339 = vshrl.u32 %v338, 7
      %v340 = vsub.s32 0, %v339
      %v341 = vrot.slane %v331, %v340
      %vm343 = vcmask 261120
      %v345 = vsel %vm343, %v319, 0
      %v348 = vsel %vm343, %v320, 0
      %v351 = vsel %vm343, %v321, 0
      %v354 = vsel %vm343, %v322, 0
      %356 = vmatprep.subr.mxu0 0.0
      %357 = vmatpush1.msra.mxu0 0.0
      %358 = vmatprep.subr.mxu0 0.0
      %359 = vmatpush1.msra.mxu0 0.0
      %360 = vmatprep.subr.mxu0 0.0
      %361 = vmatpush1.msra.mxu0 0.0
      %362 = vmatprep.subr.mxu0 0.0
      %363 = vmatpush1.msra.mxu0 0.0
      %364 = vmatprep.subr.mxu0 0.0
      %365 = vmatpush1.msra.mxu0 0.0
      %366 = vmatprep.subr.mxu0 0.0
      %367 = vmatpush1.msra.mxu0 0.0
      %368 = vmatprep.subr.mxu0 0.0
      %369 = vmatpush1.msra.mxu0 0.0
      %370 = vmatprep.subr.mxu0 0.0
      %371 = vmatpush1.msra.mxu0 0.0
      %372 = vmatprep.subr.mxu0 0.0
      %373 = vmatpush1.msra.mxu0 0.0
      %374 = vmatprep.subr.mxu0 0.0
      %375 = vmatpush1.msra.mxu0 0.0
      %376 = vmatprep.subr.mxu0 0.0
      %377 = vmatpush1.msra.mxu0 0.0
      %378 = vmatprep.subr.mxu0 0.0
      %379 = vmatpush1.msra.mxu0 0.0
      %380 = vmatprep.subr.mxu0 0.0
      %381 = vmatpush1.msra.mxu0 %v330
      %382 = vmatprep.subr.mxu0 0.0
      %383 = vmatpush1.msra.mxu0 %v329
      %384 = vmatprep.subr.mxu0 0.0
      %385 = vmatpush1.msra.mxu0 %v328
      %386 = vmatprep.subr.mxu0 0.0
      %387 = vmatpush1.msra.mxu0 %v327
      %388 = vmatprep.subr.mxu0 0.0
      %389 = vmatpush2.msra.mxu0 0.0
      %390 = vmatprep.subr.mxu0 0.0
      %391 = vmatpush2.msra.mxu0 0.0
      %392 = vmatprep.subr.mxu0 0.0
      %393 = vmatpush2.msra.mxu0 0.0
      %394 = vmatprep.subr.mxu0 0.0
      %395 = vmatpush2.msra.mxu0 0.0
      %396 = vmatprep.subr.mxu0 0.0
      %397 = vmatpush2.msra.mxu0 0.0
      %398 = vmatprep.subr.mxu0 0.0
      %399 = vmatpush2.msra.mxu0 0.0
      %400 = vmatprep.subr.mxu0 0.0
      %401 = vmatpush2.msra.mxu0 0.0
      %402 = vmatprep.subr.mxu0 0.0
      %403 = vmatpush2.msra.mxu0 0.0
      %404 = vmatprep.subr.mxu0 0.0
      %405 = vmatpush2.msra.mxu0 0.0
      %406 = vmatprep.subr.mxu0 0.0
      %407 = vmatpush2.msra.mxu0 0.0
      %408 = vmatprep.subr.mxu0 0.0
      %409 = vmatpush2.msra.mxu0 0.0
      %410 = vmatprep.subr.mxu0 0.0
      %411 = vmatpush2.msra.mxu0 0.0
      %412 = vmatprep.subr.mxu0 0.0
      %413 = vmatpush2.msra.mxu0 0.0
      %414 = vmatprep.subr.mxu0 0.0
      %415 = vmatpush2.msra.mxu0 0.0
      %416 = vmatprep.subr.mxu0 0.0
      %417 = vmatpush2.msra.mxu0 0.0
      %418 = vmatprep.subr.mxu0 0.0
      %419 = vmatpush2.msra.mxu0 0.0
      %420 = vmatprep.mubr.f32.mxu0 0.0
      %421 = vmatmul.mubr.f32.gmra.mxu0 %v345
      %v422 = vpop.f32.mrf.mxu0
      %v423 = vadd.f32 %v341, %v422
      %v424 = vpop.f32.mrf.mxu0
      %425 = vmatprep.mubr.f32.mxu0 0.0
      %426 = vmatmul.mubr.f32.gmra.mxu0 %v348
      %v427 = vpop.f32.mrf.mxu0
      %v428 = vadd.f32 %v341, %v427
      %v429 = vpop.f32.mrf.mxu0
      %430 = vmatprep.mubr.f32.mxu0 0.0
      %431 = vmatmul.mubr.f32.gmra.mxu0 %v351
      %v432 = vpop.f32.mrf.mxu0
      %v433 = vadd.f32 %v341, %v432
      %v434 = vpop.f32.mrf.mxu0
      %435 = vmatprep.mubr.f32.mxu0 0.0
      %436 = vmatmul.mubr.f32.gmra.mxu0 %v354
      %v437 = vpop.f32.mrf.mxu0
      %v438 = vadd.f32 %v341, %v437
      %v439 = vpop.f32.mrf.mxu0
      %440 = vdwg.mxu0
      %v441 = vmul.f32 %v423, %v423
      %v442 = vmul.f32 %v428, %v428
      %v443 = vmul.f32 %v433, %v433
      %v444 = vmul.f32 %v438, %v438
      %445 = vadd.xlane.f32.xlu0 %v441
      %v446 = vpop.xlane.xlu0 %445
      %447 = vadd.xlane.f32.xlu0 %v442
      %v448 = vpop.xlane.xlu0 %447
      %449 = vadd.xlane.f32.xlu0 %v443
      %v450 = vpop.xlane.xlu0 %449
      %451 = vadd.xlane.f32.xlu0 %v444
      %v452 = vpop.xlane.xlu0 %451
      %v453 = vmax.f32 %v446, 1e-24
      %v454 = vmax.f32 %v448, 1e-24
      %v455 = vmax.f32 %v450, 1e-24
      %v456 = vmax.f32 %v452, 1e-24
      %v457 = vrsqrt.pop %v453
      %v458 = vrsqrt.pop %v454
      %v459 = vrsqrt.pop %v455
      %v460 = vrsqrt.pop %v456
      %v461 = vmul.f32 %v423, %v457
      %v462 = vmul.f32 %v428, %v458
      %v463 = vmul.f32 %v433, %v459
      %v464 = vmul.f32 %v438, %v460
      %v465 = vmul.f32 %v461, 30.0
      %v466 = vmul.f32 %v462, 30.0
      %v467 = vmul.f32 %v463, 30.0
      %v468 = vmul.f32 %v464, 30.0
      %469 = vmatprep.subr.mxu0 0.0
      %470 = vmatpush1.xpose.msra.mxu0 0.0
      %471 = vmatprep.subr.mxu0 0.0
      %472 = vmatpush1.xpose.msra.mxu0 0.0
      %473 = vmatprep.subr.mxu0 0.0
      %474 = vmatpush1.xpose.msra.mxu0 0.0
      %475 = vmatprep.subr.mxu0 0.0
      %476 = vmatpush1.xpose.msra.mxu0 0.0
      %477 = vmatprep.subr.mxu0 0.0
      %478 = vmatpush1.xpose.msra.mxu0 0.0
      %479 = vmatprep.subr.mxu0 0.0
      %480 = vmatpush1.xpose.msra.mxu0 0.0
      %481 = vmatprep.subr.mxu0 0.0
      %482 = vmatpush1.xpose.msra.mxu0 0.0
      %483 = vmatprep.subr.mxu0 0.0
      %484 = vmatpush1.xpose.msra.mxu0 0.0
      %485 = vmatprep.subr.mxu0 0.0
      %486 = vmatpush1.xpose.msra.mxu0 0.0
      %487 = vmatprep.subr.mxu0 0.0
      %488 = vmatpush1.xpose.msra.mxu0 0.0
      %489 = vmatprep.subr.mxu0 0.0
      %490 = vmatpush1.xpose.msra.mxu0 0.0
      %491 = vmatprep.subr.mxu0 0.0
      %492 = vmatpush1.xpose.msra.mxu0 0.0
      %493 = vmatprep.subr.mxu0 0.0
      %494 = vmatpush1.xpose.msra.mxu0 %v464
      %495 = vmatprep.subr.mxu0 0.0
      %496 = vmatpush1.xpose.msra.mxu0 %v463
      %497 = vmatprep.subr.mxu0 0.0
      %498 = vmatpush1.xpose.msra.mxu0 %v462
      %499 = vmatprep.subr.mxu0 0.0
      %500 = vmatpush1.xpose.msra.mxu0 %v461
      %501 = vmatprep.subr.mxu0 0.0
      %502 = vmatpush2.xpose.msra.mxu0 0.0
      %503 = vmatprep.subr.mxu0 0.0
      %504 = vmatpush2.xpose.msra.mxu0 0.0
      %505 = vmatprep.subr.mxu0 0.0
      %506 = vmatpush2.xpose.msra.mxu0 0.0
      %507 = vmatprep.subr.mxu0 0.0
      %508 = vmatpush2.xpose.msra.mxu0 0.0
      %509 = vmatprep.subr.mxu0 0.0
      %510 = vmatpush2.xpose.msra.mxu0 0.0
      %511 = vmatprep.subr.mxu0 0.0
      %512 = vmatpush2.xpose.msra.mxu0 0.0
      %513 = vmatprep.subr.mxu0 0.0
      %514 = vmatpush2.xpose.msra.mxu0 0.0
      %515 = vmatprep.subr.mxu0 0.0
      %516 = vmatpush2.xpose.msra.mxu0 0.0
      %517 = vmatprep.subr.mxu0 0.0
      %518 = vmatpush2.xpose.msra.mxu0 0.0
      %519 = vmatprep.subr.mxu0 0.0
      %520 = vmatpush2.xpose.msra.mxu0 0.0
      %521 = vmatprep.subr.mxu0 0.0
      %522 = vmatpush2.xpose.msra.mxu0 0.0
      %523 = vmatprep.subr.mxu0 0.0
      %524 = vmatpush2.xpose.msra.mxu0 0.0
      %525 = vmatprep.subr.mxu0 0.0
      %526 = vmatpush2.xpose.msra.mxu0 0.0
      %527 = vmatprep.subr.mxu0 0.0
      %528 = vmatpush2.xpose.msra.mxu0 0.0
      %529 = vmatprep.subr.mxu0 0.0
      %530 = vmatpush2.xpose.msra.mxu0 0.0
      %531 = vmatprep.subr.mxu0 0.0
      %532 = vmatpush2.xpose.msra.mxu0 0.0
      %533 = vmatprep.mubr.f32.mxu0 0.0
      %534 = vmatmul.mubr.f32.gmra.mxu0 %v465
      %v535 = vpop.f32.mrf.mxu0
      %v536 = vadd.f32 0.0, %v535
      %v537 = vpop.f32.mrf.mxu0
      %538 = vmatprep.mubr.f32.mxu0 0.0
      %539 = vmatmul.mubr.f32.gmra.mxu0 %v466
      %v540 = vpop.f32.mrf.mxu0
      %v541 = vadd.f32 0.0, %v540
      %v542 = vpop.f32.mrf.mxu0
      %543 = vmatprep.mubr.f32.mxu0 0.0
      %544 = vmatmul.mubr.f32.gmra.mxu0 %v467
      %v545 = vpop.f32.mrf.mxu0
      %v546 = vadd.f32 0.0, %v545
      %v547 = vpop.f32.mrf.mxu0
      %548 = vmatprep.mubr.f32.mxu0 0.0
      %549 = vmatmul.mubr.f32.gmra.mxu0 %v468
      %v550 = vpop.f32.mrf.mxu0
      %v551 = vadd.f32 0.0, %v550
      %v552 = vpop.f32.mrf.mxu0
      %553 = vdwg.mxu0
      %v554 = vsel %vm343, %v536, -inf
      %555 = vmax.xlane.f32.xlu0 %v554
      %v556 = vpop.xlane.xlu0 %555
      %v557 = vsel %vm343, %v541, -inf
      %558 = vmax.xlane.f32.xlu0 %v557
      %v559 = vpop.xlane.xlu0 %558
      %v560 = vsel %vm343, %v546, -inf
      %561 = vmax.xlane.f32.xlu0 %v560
      %v562 = vpop.xlane.xlu0 %561
      %v563 = vsel %vm343, %v551, -inf
      %564 = vmax.xlane.f32.xlu0 %v563
      %v565 = vpop.xlane.xlu0 %564
      %v566 = vsub.f32 %v536, %v556
      %v567 = vsub.f32 %v541, %v559
      %v568 = vsub.f32 %v546, %v562
      %v569 = vsub.f32 %v551, %v565
      %v570 = vmul.f32 %v566, 1.442695
      %v571 = vpow.pop %v570
      %v572 = vmul.f32 %v567, 1.442695
      %v573 = vpow.pop %v572
      %v574 = vmul.f32 %v568, 1.442695
      %v575 = vpow.pop %v574
      %v576 = vmul.f32 %v569, 1.442695
      %v577 = vpow.pop %v576
      %v578 = vsel %vm343, %v571, 0.0
      %579 = vadd.xlane.f32.xlu0 %v578
      %v580 = vpop.xlane.xlu0 %579
      %v581 = vsel %vm343, %v573, 0.0
      %582 = vadd.xlane.f32.xlu0 %v581
      %v583 = vpop.xlane.xlu0 %582
      %v584 = vsel %vm343, %v575, 0.0
      %585 = vadd.xlane.f32.xlu0 %v584
      %v586 = vpop.xlane.xlu0 %585
      %v587 = vsel %vm343, %v577, 0.0
      %588 = vadd.xlane.f32.xlu0 %v587
      %v589 = vpop.xlane.xlu0 %588
      %v590 = vrcp.pop %v580
      %v591 = vrcp.pop %v583
      %v592 = vrcp.pop %v586
      %v593 = vrcp.pop %v589
      %v594 = vmul.f32 %v571, %v590
      %v595 = vmul.f32 %v573, %v591
      %v596 = vmul.f32 %v575, %v592
      %v597 = vmul.f32 %v577, %v593
      %v599 = vsel %vm343, %v594, 0
      %v602 = vsel %vm343, %v595, 0
      %v605 = vsel %vm343, %v596, 0
      %v608 = vsel %vm343, %v597, 0
      %610 = vmatprep.subr.mxu0 0.0
      %611 = vmatpush1.msra.mxu0 0.0
      %612 = vmatprep.subr.mxu0 0.0
      %613 = vmatpush1.msra.mxu0 0.0
      %614 = vmatprep.subr.mxu0 0.0
      %615 = vmatpush1.msra.mxu0 0.0
      %616 = vmatprep.subr.mxu0 0.0
      %617 = vmatpush1.msra.mxu0 0.0
      %618 = vmatprep.subr.mxu0 0.0
      %619 = vmatpush1.msra.mxu0 0.0
      %620 = vmatprep.subr.mxu0 0.0
      %621 = vmatpush1.msra.mxu0 0.0
      %622 = vmatprep.subr.mxu0 0.0
      %623 = vmatpush1.msra.mxu0 0.0
      %624 = vmatprep.subr.mxu0 0.0
      %625 = vmatpush1.msra.mxu0 0.0
      %626 = vmatprep.subr.mxu0 0.0
      %627 = vmatpush1.msra.mxu0 0.0
      %628 = vmatprep.subr.mxu0 0.0
      %629 = vmatpush1.msra.mxu0 0.0
      %630 = vmatprep.subr.mxu0 0.0
      %631 = vmatpush1.msra.mxu0 0.0
      %632 = vmatprep.subr.mxu0 0.0
      %633 = vmatpush1.msra.mxu0 0.0
      %634 = vmatprep.subr.mxu0 0.0
      %635 = vmatpush1.msra.mxu0 %v322
      %636 = vmatprep.subr.mxu0 0.0
      %637 = vmatpush1.msra.mxu0 %v321
      %638 = vmatprep.subr.mxu0 0.0
      %639 = vmatpush1.msra.mxu0 %v320
      %640 = vmatprep.subr.mxu0 0.0
      %641 = vmatpush1.msra.mxu0 %v319
      %642 = vmatprep.subr.mxu0 0.0
      %643 = vmatpush2.msra.mxu0 0.0
      %644 = vmatprep.subr.mxu0 0.0
      %645 = vmatpush2.msra.mxu0 0.0
      %646 = vmatprep.subr.mxu0 0.0
      %647 = vmatpush2.msra.mxu0 0.0
      %648 = vmatprep.subr.mxu0 0.0
      %649 = vmatpush2.msra.mxu0 0.0
      %650 = vmatprep.subr.mxu0 0.0
      %651 = vmatpush2.msra.mxu0 0.0
      %652 = vmatprep.subr.mxu0 0.0
      %653 = vmatpush2.msra.mxu0 0.0
      %654 = vmatprep.subr.mxu0 0.0
      %655 = vmatpush2.msra.mxu0 0.0
      %656 = vmatprep.subr.mxu0 0.0
      %657 = vmatpush2.msra.mxu0 0.0
      %658 = vmatprep.subr.mxu0 0.0
      %659 = vmatpush2.msra.mxu0 0.0
      %660 = vmatprep.subr.mxu0 0.0
      %661 = vmatpush2.msra.mxu0 0.0
      %662 = vmatprep.subr.mxu0 0.0
      %663 = vmatpush2.msra.mxu0 0.0
      %664 = vmatprep.subr.mxu0 0.0
      %665 = vmatpush2.msra.mxu0 0.0
      %666 = vmatprep.subr.mxu0 0.0
      %667 = vmatpush2.msra.mxu0 0.0
      %668 = vmatprep.subr.mxu0 0.0
      %669 = vmatpush2.msra.mxu0 0.0
      %670 = vmatprep.subr.mxu0 0.0
      %671 = vmatpush2.msra.mxu0 0.0
      %672 = vmatprep.subr.mxu0 0.0
      %673 = vmatpush2.msra.mxu0 0.0
      %674 = vmatprep.mubr.f32.mxu0 0.0
      %675 = vmatmul.mubr.f32.gmra.mxu0 %v599
      %v676 = vpop.f32.mrf.mxu0
      %v677 = vadd.f32 0.0, %v676
      %v678 = vpop.f32.mrf.mxu0
      %679 = vmatprep.mubr.f32.mxu0 0.0
      %680 = vmatmul.mubr.f32.gmra.mxu0 %v602
      %v681 = vpop.f32.mrf.mxu0
      %v682 = vadd.f32 0.0, %v681
      %v683 = vpop.f32.mrf.mxu0
      %684 = vmatprep.mubr.f32.mxu0 0.0
      %685 = vmatmul.mubr.f32.gmra.mxu0 %v605
      %v686 = vpop.f32.mrf.mxu0
      %v687 = vadd.f32 0.0, %v686
      %v688 = vpop.f32.mrf.mxu0
      %689 = vmatprep.mubr.f32.mxu0 0.0
      %690 = vmatmul.mubr.f32.gmra.mxu0 %v608
      %v691 = vpop.f32.mrf.mxu0
      %v692 = vadd.f32 0.0, %v691
      %v693 = vpop.f32.mrf.mxu0
      %694 = vdwg.mxu0
      %v695 = vadd.f32 %v319, %v677
      %v696 = vadd.f32 %v320, %v682
      %v697 = vadd.f32 %v321, %v687
      %v698 = vadd.f32 %v322, %v692
      %v699 = vmul.f32 %v695, %v695
      %v700 = vmul.f32 %v696, %v696
      %v701 = vmul.f32 %v697, %v697
      %v702 = vmul.f32 %v698, %v698
      %v703 = vsel %vm343, %v699, 0.0
      %704 = vadd.xlane.f32.xlu0 %v703
      %v705 = vpop.xlane.xlu0 %704
      %v706 = vsel %vm343, %v700, 0.0
      %707 = vadd.xlane.f32.xlu0 %v706
      %v708 = vpop.xlane.xlu0 %707
      %v709 = vsel %vm343, %v701, 0.0
      %710 = vadd.xlane.f32.xlu0 %v709
      %v711 = vpop.xlane.xlu0 %710
      %v712 = vsel %vm343, %v702, 0.0
      %713 = vadd.xlane.f32.xlu0 %v712
      %v714 = vpop.xlane.xlu0 %713
      %v715 = vadd.f32 %v705, %v708
      %v716 = vrot.slane %v715, 4
      %v717 = vadd.f32 %v715, %v716
      %v718 = vrot.slane %v717, 2
      %v719 = vadd.f32 %v717, %v718
      %v720 = vrot.slane %v719, 1
      %v721 = vadd.f32 %v719, %v720
      %v722 = vadd.f32 %v711, %v714
      %v723 = vrot.slane %v722, 4
      %v724 = vadd.f32 %v722, %v723
      %v725 = vrot.slane %v724, 2
      %v726 = vadd.f32 %v724, %v725
      %v727 = vrot.slane %v726, 1
      %v728 = vadd.f32 %v726, %v727
      %v729 = vadd.f32 %v721, 1e-05
      %v730 = vadd.f32 %v728, 1e-05
      %v731 = vrsqrt.pop %v729
      %v732 = vrsqrt.pop %v730
      %v733 = vmul.f32 %v695, %v731
      %v734 = vmul.f32 %v696, %v731
      %v735 = vmul.f32 %v697, %v732
      %v736 = vmul.f32 %v698, %v732
      %v738 = vlaneseq
      %v739 = vshrl.u32 %v738, 7
      %v740 = vsub.s32 0, %v739
      %v741 = vrot.slane %v336, %v740
      %v744 = vsel %vm343, %v733, 0
      %v747 = vsel %vm343, %v734, 0
      %v750 = vsel %vm343, %v735, 0
      %v753 = vsel %vm343, %v736, 0
      %755 = vmatprep.subr.mxu0 0.0
      %756 = vmatpush1.msra.mxu0 0.0
      %757 = vmatprep.subr.mxu0 0.0
      %758 = vmatpush1.msra.mxu0 0.0
      %759 = vmatprep.subr.mxu0 0.0
      %760 = vmatpush1.msra.mxu0 0.0
      %761 = vmatprep.subr.mxu0 0.0
      %762 = vmatpush1.msra.mxu0 0.0
      %763 = vmatprep.subr.mxu0 0.0
      %764 = vmatpush1.msra.mxu0 0.0
      %765 = vmatprep.subr.mxu0 0.0
      %766 = vmatpush1.msra.mxu0 0.0
      %767 = vmatprep.subr.mxu0 0.0
      %768 = vmatpush1.msra.mxu0 0.0
      %769 = vmatprep.subr.mxu0 0.0
      %770 = vmatpush1.msra.mxu0 0.0
      %771 = vmatprep.subr.mxu0 0.0
      %772 = vmatpush1.msra.mxu0 0.0
      %773 = vmatprep.subr.mxu0 0.0
      %774 = vmatpush1.msra.mxu0 0.0
      %775 = vmatprep.subr.mxu0 0.0
      %776 = vmatpush1.msra.mxu0 0.0
      %777 = vmatprep.subr.mxu0 0.0
      %778 = vmatpush1.msra.mxu0 0.0
      %779 = vmatprep.subr.mxu0 0.0
      %780 = vmatpush1.msra.mxu0 %v335
      %781 = vmatprep.subr.mxu0 0.0
      %782 = vmatpush1.msra.mxu0 %v334
      %783 = vmatprep.subr.mxu0 0.0
      %784 = vmatpush1.msra.mxu0 %v333
      %785 = vmatprep.subr.mxu0 0.0
      %786 = vmatpush1.msra.mxu0 %v332
      %787 = vmatprep.subr.mxu0 0.0
      %788 = vmatpush2.msra.mxu0 0.0
      %789 = vmatprep.subr.mxu0 0.0
      %790 = vmatpush2.msra.mxu0 0.0
      %791 = vmatprep.subr.mxu0 0.0
      %792 = vmatpush2.msra.mxu0 0.0
      %793 = vmatprep.subr.mxu0 0.0
      %794 = vmatpush2.msra.mxu0 0.0
      %795 = vmatprep.subr.mxu0 0.0
      %796 = vmatpush2.msra.mxu0 0.0
      %797 = vmatprep.subr.mxu0 0.0
      %798 = vmatpush2.msra.mxu0 0.0
      %799 = vmatprep.subr.mxu0 0.0
      %800 = vmatpush2.msra.mxu0 0.0
      %801 = vmatprep.subr.mxu0 0.0
      %802 = vmatpush2.msra.mxu0 0.0
      %803 = vmatprep.subr.mxu0 0.0
      %804 = vmatpush2.msra.mxu0 0.0
      %805 = vmatprep.subr.mxu0 0.0
      %806 = vmatpush2.msra.mxu0 0.0
      %807 = vmatprep.subr.mxu0 0.0
      %808 = vmatpush2.msra.mxu0 0.0
      %809 = vmatprep.subr.mxu0 0.0
      %810 = vmatpush2.msra.mxu0 0.0
      %811 = vmatprep.subr.mxu0 0.0
      %812 = vmatpush2.msra.mxu0 0.0
      %813 = vmatprep.subr.mxu0 0.0
      %814 = vmatpush2.msra.mxu0 0.0
      %815 = vmatprep.subr.mxu0 0.0
      %816 = vmatpush2.msra.mxu0 0.0
      %817 = vmatprep.subr.mxu0 0.0
      %818 = vmatpush2.msra.mxu0 0.0
      %819 = vmatprep.mubr.f32.mxu0 0.0
      %820 = vmatmul.mubr.f32.gmra.mxu0 %v744
      %v821 = vpop.f32.mrf.mxu0
      %v822 = vadd.f32 %v741, %v821
      %v823 = vpop.f32.mrf.mxu0
      %824 = vmatprep.mubr.f32.mxu0 0.0
      %825 = vmatmul.mubr.f32.gmra.mxu0 %v747
      %v826 = vpop.f32.mrf.mxu0
      %v827 = vadd.f32 %v741, %v826
      %v828 = vpop.f32.mrf.mxu0
      %829 = vmatprep.mubr.f32.mxu0 0.0
      %830 = vmatmul.mubr.f32.gmra.mxu0 %v750
      %v831 = vpop.f32.mrf.mxu0
      %v832 = vadd.f32 %v741, %v831
      %v833 = vpop.f32.mrf.mxu0
      %834 = vmatprep.mubr.f32.mxu0 0.0
      %835 = vmatmul.mubr.f32.gmra.mxu0 %v753
      %v836 = vpop.f32.mrf.mxu0
      %v837 = vadd.f32 %v741, %v836
      %v838 = vpop.f32.mrf.mxu0
      %839 = vdwg.mxu0
      %v840 = vmul.f32 %v822, %v822
      %v841 = vmul.f32 %v827, %v827
      %v842 = vmul.f32 %v832, %v832
      %v843 = vmul.f32 %v837, %v837
      %844 = vadd.xlane.f32.xlu0 %v840
      %v845 = vpop.xlane.xlu0 %844
      %846 = vadd.xlane.f32.xlu0 %v841
      %v847 = vpop.xlane.xlu0 %846
      %848 = vadd.xlane.f32.xlu0 %v842
      %v849 = vpop.xlane.xlu0 %848
      %850 = vadd.xlane.f32.xlu0 %v843
      %v851 = vpop.xlane.xlu0 %850
      %v852 = vmax.f32 %v845, 1e-24
      %v853 = vmax.f32 %v847, 1e-24
      %v854 = vmax.f32 %v849, 1e-24
      %v855 = vmax.f32 %v851, 1e-24
      %v856 = vrsqrt.pop %v852
      %v857 = vrsqrt.pop %v853
      %v858 = vrsqrt.pop %v854
      %v859 = vrsqrt.pop %v855
      %v860 = vmul.f32 %v822, %v856
      %v861 = vmul.f32 %v827, %v857
      %v862 = vmul.f32 %v832, %v858
      %v863 = vmul.f32 %v837, %v859
      %v864 = vmul.f32 %v860, 30.0
      %v865 = vmul.f32 %v861, 30.0
      %v866 = vmul.f32 %v862, 30.0
      %v867 = vmul.f32 %v863, 30.0
      %v869 = vsel %vm343, %v323, 0
      %v872 = vsel %vm343, %v324, 0
      %874 = vmatprep.subr.mxu0 0.0
      %875 = vmatpush1.msra.mxu0 0.0
      %876 = vmatprep.subr.mxu0 0.0
      %877 = vmatpush1.msra.mxu0 0.0
      %878 = vmatprep.subr.mxu0 0.0
      %879 = vmatpush1.msra.mxu0 0.0
      %880 = vmatprep.subr.mxu0 0.0
      %881 = vmatpush1.msra.mxu0 0.0
      %882 = vmatprep.subr.mxu0 0.0
      %883 = vmatpush1.msra.mxu0 0.0
      %884 = vmatprep.subr.mxu0 0.0
      %885 = vmatpush1.msra.mxu0 0.0
      %886 = vmatprep.subr.mxu0 0.0
      %887 = vmatpush1.msra.mxu0 0.0
      %888 = vmatprep.subr.mxu0 0.0
      %889 = vmatpush1.msra.mxu0 0.0
      %890 = vmatprep.subr.mxu0 0.0
      %891 = vmatpush1.msra.mxu0 0.0
      %892 = vmatprep.subr.mxu0 0.0
      %893 = vmatpush1.msra.mxu0 0.0
      %894 = vmatprep.subr.mxu0 0.0
      %895 = vmatpush1.msra.mxu0 0.0
      %896 = vmatprep.subr.mxu0 0.0
      %897 = vmatpush1.msra.mxu0 0.0
      %898 = vmatprep.subr.mxu0 0.0
      %899 = vmatpush1.msra.mxu0 %v335
      %900 = vmatprep.subr.mxu0 0.0
      %901 = vmatpush1.msra.mxu0 %v334
      %902 = vmatprep.subr.mxu0 0.0
      %903 = vmatpush1.msra.mxu0 %v333
      %904 = vmatprep.subr.mxu0 0.0
      %905 = vmatpush1.msra.mxu0 %v332
      %906 = vmatprep.subr.mxu0 0.0
      %907 = vmatpush2.msra.mxu0 0.0
      %908 = vmatprep.subr.mxu0 0.0
      %909 = vmatpush2.msra.mxu0 0.0
      %910 = vmatprep.subr.mxu0 0.0
      %911 = vmatpush2.msra.mxu0 0.0
      %912 = vmatprep.subr.mxu0 0.0
      %913 = vmatpush2.msra.mxu0 0.0
      %914 = vmatprep.subr.mxu0 0.0
      %915 = vmatpush2.msra.mxu0 0.0
      %916 = vmatprep.subr.mxu0 0.0
      %917 = vmatpush2.msra.mxu0 0.0
      %918 = vmatprep.subr.mxu0 0.0
      %919 = vmatpush2.msra.mxu0 0.0
      %920 = vmatprep.subr.mxu0 0.0
      %921 = vmatpush2.msra.mxu0 0.0
      %922 = vmatprep.subr.mxu0 0.0
      %923 = vmatpush2.msra.mxu0 0.0
      %924 = vmatprep.subr.mxu0 0.0
      %925 = vmatpush2.msra.mxu0 0.0
      %926 = vmatprep.subr.mxu0 0.0
      %927 = vmatpush2.msra.mxu0 0.0
      %928 = vmatprep.subr.mxu0 0.0
      %929 = vmatpush2.msra.mxu0 0.0
      %930 = vmatprep.subr.mxu0 0.0
      %931 = vmatpush2.msra.mxu0 0.0
      %932 = vmatprep.subr.mxu0 0.0
      %933 = vmatpush2.msra.mxu0 0.0
      %934 = vmatprep.subr.mxu0 0.0
      %935 = vmatpush2.msra.mxu0 0.0
      %936 = vmatprep.subr.mxu0 0.0
      %937 = vmatpush2.msra.mxu0 0.0
      %938 = vmatprep.mubr.f32.mxu0 0.0
      %939 = vmatmul.mubr.f32.gmra.mxu0 %v869
      %v940 = vpop.f32.mrf.mxu0
      %v941 = vadd.f32 %v741, %v940
      %v942 = vpop.f32.mrf.mxu0
      %943 = vmatprep.mubr.f32.mxu0 0.0
      %944 = vmatmul.mubr.f32.gmra.mxu0 %v872
      %v945 = vpop.f32.mrf.mxu0
      %v946 = vadd.f32 %v741, %v945
      %v947 = vpop.f32.mrf.mxu0
      %948 = vdwg.mxu0
      %v949 = vmul.f32 %v941, %v941
      %v950 = vmul.f32 %v946, %v946
      %951 = vadd.xlane.f32.xlu0 %v949
      %v952 = vpop.xlane.xlu0 %951
      %953 = vadd.xlane.f32.xlu0 %v950
      %v954 = vpop.xlane.xlu0 %953
      %v955 = vmax.f32 %v952, 1e-24
      %v956 = vmax.f32 %v954, 1e-24
      %v957 = vrsqrt.pop %v955
      %v958 = vrsqrt.pop %v956
      %v959 = vmul.f32 %v941, %v957
      %v960 = vmul.f32 %v946, %v958
      %961 = vmatprep.subr.mxu0 0.0
      %962 = vmatpush1.xpose.msra.mxu0 0.0
      %963 = vmatprep.subr.mxu0 0.0
      %964 = vmatpush1.xpose.msra.mxu0 0.0
      %965 = vmatprep.subr.mxu0 0.0
      %966 = vmatpush1.xpose.msra.mxu0 0.0
      %967 = vmatprep.subr.mxu0 0.0
      %968 = vmatpush1.xpose.msra.mxu0 0.0
      %969 = vmatprep.subr.mxu0 0.0
      %970 = vmatpush1.xpose.msra.mxu0 0.0
      %971 = vmatprep.subr.mxu0 0.0
      %972 = vmatpush1.xpose.msra.mxu0 0.0
      %973 = vmatprep.subr.mxu0 0.0
      %974 = vmatpush1.xpose.msra.mxu0 0.0
      %975 = vmatprep.subr.mxu0 0.0
      %976 = vmatpush1.xpose.msra.mxu0 0.0
      %977 = vmatprep.subr.mxu0 0.0
      %978 = vmatpush1.xpose.msra.mxu0 0.0
      %979 = vmatprep.subr.mxu0 0.0
      %980 = vmatpush1.xpose.msra.mxu0 0.0
      %981 = vmatprep.subr.mxu0 0.0
      %982 = vmatpush1.xpose.msra.mxu0 0.0
      %983 = vmatprep.subr.mxu0 0.0
      %984 = vmatpush1.xpose.msra.mxu0 0.0
      %985 = vmatprep.subr.mxu0 0.0
      %986 = vmatpush1.xpose.msra.mxu0 0.0
      %987 = vmatprep.subr.mxu0 0.0
      %988 = vmatpush1.xpose.msra.mxu0 0.0
      %989 = vmatprep.subr.mxu0 0.0
      %990 = vmatpush1.xpose.msra.mxu0 %v960
      %991 = vmatprep.subr.mxu0 0.0
      %992 = vmatpush1.xpose.msra.mxu0 %v959
      %993 = vmatprep.subr.mxu0 0.0
      %994 = vmatpush2.xpose.msra.mxu0 0.0
      %995 = vmatprep.subr.mxu0 0.0
      %996 = vmatpush2.xpose.msra.mxu0 0.0
      %997 = vmatprep.subr.mxu0 0.0
      %998 = vmatpush2.xpose.msra.mxu0 0.0
      %999 = vmatprep.subr.mxu0 0.0
      %1000 = vmatpush2.xpose.msra.mxu0 0.0
      %1001 = vmatprep.subr.mxu0 0.0
      %1002 = vmatpush2.xpose.msra.mxu0 0.0
      %1003 = vmatprep.subr.mxu0 0.0
      %1004 = vmatpush2.xpose.msra.mxu0 0.0
      %1005 = vmatprep.subr.mxu0 0.0
      %1006 = vmatpush2.xpose.msra.mxu0 0.0
      %1007 = vmatprep.subr.mxu0 0.0
      %1008 = vmatpush2.xpose.msra.mxu0 0.0
      %1009 = vmatprep.subr.mxu0 0.0
      %1010 = vmatpush2.xpose.msra.mxu0 0.0
      %1011 = vmatprep.subr.mxu0 0.0
      %1012 = vmatpush2.xpose.msra.mxu0 0.0
      %1013 = vmatprep.subr.mxu0 0.0
      %1014 = vmatpush2.xpose.msra.mxu0 0.0
      %1015 = vmatprep.subr.mxu0 0.0
      %1016 = vmatpush2.xpose.msra.mxu0 0.0
      %1017 = vmatprep.subr.mxu0 0.0
      %1018 = vmatpush2.xpose.msra.mxu0 0.0
      %1019 = vmatprep.subr.mxu0 0.0
      %1020 = vmatpush2.xpose.msra.mxu0 0.0
      %1021 = vmatprep.subr.mxu0 0.0
      %1022 = vmatpush2.xpose.msra.mxu0 0.0
      %1023 = vmatprep.subr.mxu0 0.0
      %1024 = vmatpush2.xpose.msra.mxu0 0.0
      %1025 = vmatprep.mubr.f32.mxu0 0.0
      %1026 = vmatmul.mubr.f32.gmra.mxu0 %v864
      %v1027 = vpop.f32.mrf.mxu0
      %v1028 = vadd.f32 0.0, %v1027
      %v1029 = vpop.f32.mrf.mxu0
      %1030 = vmatprep.mubr.f32.mxu0 0.0
      %1031 = vmatmul.mubr.f32.gmra.mxu0 %v865
      %v1032 = vpop.f32.mrf.mxu0
      %v1033 = vadd.f32 0.0, %v1032
      %v1034 = vpop.f32.mrf.mxu0
      %1035 = vmatprep.mubr.f32.mxu0 0.0
      %1036 = vmatmul.mubr.f32.gmra.mxu0 %v866
      %v1037 = vpop.f32.mrf.mxu0
      %v1038 = vadd.f32 0.0, %v1037
      %v1039 = vpop.f32.mrf.mxu0
      %1040 = vmatprep.mubr.f32.mxu0 0.0
      %1041 = vmatmul.mubr.f32.gmra.mxu0 %v867
      %v1042 = vpop.f32.mrf.mxu0
      %v1043 = vadd.f32 0.0, %v1042
      %v1044 = vpop.f32.mrf.mxu0
      %1045 = vdwg.mxu0
      %vm1046 = vcmask 130048
      %v1047 = vsel %vm1046, %v1028, -inf
      %1048 = vmax.xlane.f32.xlu0 %v1047
      %v1049 = vpop.xlane.xlu0 %1048
      %v1050 = vsel %vm1046, %v1033, -inf
      %1051 = vmax.xlane.f32.xlu0 %v1050
      %v1052 = vpop.xlane.xlu0 %1051
      %v1053 = vsel %vm1046, %v1038, -inf
      %1054 = vmax.xlane.f32.xlu0 %v1053
      %v1055 = vpop.xlane.xlu0 %1054
      %v1056 = vsel %vm1046, %v1043, -inf
      %1057 = vmax.xlane.f32.xlu0 %v1056
      %v1058 = vpop.xlane.xlu0 %1057
      %v1059 = vsub.f32 %v1028, %v1049
      %v1060 = vsub.f32 %v1033, %v1052
      %v1061 = vsub.f32 %v1038, %v1055
      %v1062 = vsub.f32 %v1043, %v1058
      %v1063 = vmul.f32 %v1059, 1.442695
      %v1064 = vpow.pop %v1063
      %v1065 = vmul.f32 %v1060, 1.442695
      %v1066 = vpow.pop %v1065
      %v1067 = vmul.f32 %v1061, 1.442695
      %v1068 = vpow.pop %v1067
      %v1069 = vmul.f32 %v1062, 1.442695
      %v1070 = vpow.pop %v1069
      %v1071 = vsel %vm1046, %v1064, 0.0
      %1072 = vadd.xlane.f32.xlu0 %v1071
      %v1073 = vpop.xlane.xlu0 %1072
      %v1074 = vsel %vm1046, %v1066, 0.0
      %1075 = vadd.xlane.f32.xlu0 %v1074
      %v1076 = vpop.xlane.xlu0 %1075
      %v1077 = vsel %vm1046, %v1068, 0.0
      %1078 = vadd.xlane.f32.xlu0 %v1077
      %v1079 = vpop.xlane.xlu0 %1078
      %v1080 = vsel %vm1046, %v1070, 0.0
      %1081 = vadd.xlane.f32.xlu0 %v1080
      %v1082 = vpop.xlane.xlu0 %1081
      %v1083 = vrcp.pop %v1073
      %v1084 = vrcp.pop %v1076
      %v1085 = vrcp.pop %v1079
      %v1086 = vrcp.pop %v1082
      %v1087 = vmul.f32 %v1064, %v1083
      %v1088 = vmul.f32 %v1066, %v1084
      %v1089 = vmul.f32 %v1068, %v1085
      %v1090 = vmul.f32 %v1070, %v1086
      %v1092 = vsel %vm1046, %v1087, 0
      %v1095 = vsel %vm1046, %v1088, 0
      %v1098 = vsel %vm1046, %v1089, 0
      %v1101 = vsel %vm1046, %v1090, 0
      %1103 = vmatprep.subr.mxu0 0.0
      %1104 = vmatpush1.msra.mxu0 0.0
      %1105 = vmatprep.subr.mxu0 0.0
      %1106 = vmatpush1.msra.mxu0 0.0
      %1107 = vmatprep.subr.mxu0 0.0
      %1108 = vmatpush1.msra.mxu0 0.0
      %1109 = vmatprep.subr.mxu0 0.0
      %1110 = vmatpush1.msra.mxu0 0.0
      %1111 = vmatprep.subr.mxu0 0.0
      %1112 = vmatpush1.msra.mxu0 0.0
      %1113 = vmatprep.subr.mxu0 0.0
      %1114 = vmatpush1.msra.mxu0 0.0
      %1115 = vmatprep.subr.mxu0 0.0
      %1116 = vmatpush1.msra.mxu0 0.0
      %1117 = vmatprep.subr.mxu0 0.0
      %1118 = vmatpush1.msra.mxu0 0.0
      %1119 = vmatprep.subr.mxu0 0.0
      %1120 = vmatpush1.msra.mxu0 0.0
      %1121 = vmatprep.subr.mxu0 0.0
      %1122 = vmatpush1.msra.mxu0 0.0
      %1123 = vmatprep.subr.mxu0 0.0
      %1124 = vmatpush1.msra.mxu0 0.0
      %1125 = vmatprep.subr.mxu0 0.0
      %1126 = vmatpush1.msra.mxu0 0.0
      %1127 = vmatprep.subr.mxu0 0.0
      %1128 = vmatpush1.msra.mxu0 0.0
      %1129 = vmatprep.subr.mxu0 0.0
      %1130 = vmatpush1.msra.mxu0 0.0
      %1131 = vmatprep.subr.mxu0 0.0
      %1132 = vmatpush1.msra.mxu0 %v326
      %1133 = vmatprep.subr.mxu0 0.0
      %1134 = vmatpush1.msra.mxu0 %v325
      %1135 = vmatprep.subr.mxu0 0.0
      %1136 = vmatpush2.msra.mxu0 0.0
      %1137 = vmatprep.subr.mxu0 0.0
      %1138 = vmatpush2.msra.mxu0 0.0
      %1139 = vmatprep.subr.mxu0 0.0
      %1140 = vmatpush2.msra.mxu0 0.0
      %1141 = vmatprep.subr.mxu0 0.0
      %1142 = vmatpush2.msra.mxu0 0.0
      %1143 = vmatprep.subr.mxu0 0.0
      %1144 = vmatpush2.msra.mxu0 0.0
      %1145 = vmatprep.subr.mxu0 0.0
      %1146 = vmatpush2.msra.mxu0 0.0
      %1147 = vmatprep.subr.mxu0 0.0
      %1148 = vmatpush2.msra.mxu0 0.0
      %1149 = vmatprep.subr.mxu0 0.0
      %1150 = vmatpush2.msra.mxu0 0.0
      %1151 = vmatprep.subr.mxu0 0.0
      %1152 = vmatpush2.msra.mxu0 0.0
      %1153 = vmatprep.subr.mxu0 0.0
      %1154 = vmatpush2.msra.mxu0 0.0
      %1155 = vmatprep.subr.mxu0 0.0
      %1156 = vmatpush2.msra.mxu0 0.0
      %1157 = vmatprep.subr.mxu0 0.0
      %1158 = vmatpush2.msra.mxu0 0.0
      %1159 = vmatprep.subr.mxu0 0.0
      %1160 = vmatpush2.msra.mxu0 0.0
      %1161 = vmatprep.subr.mxu0 0.0
      %1162 = vmatpush2.msra.mxu0 0.0
      %1163 = vmatprep.subr.mxu0 0.0
      %1164 = vmatpush2.msra.mxu0 0.0
      %1165 = vmatprep.subr.mxu0 0.0
      %1166 = vmatpush2.msra.mxu0 0.0
      %1167 = vmatprep.mubr.f32.mxu0 0.0
      %1168 = vmatmul.mubr.f32.gmra.mxu0 %v1092
      %v1169 = vpop.f32.mrf.mxu0
      %v1170 = vadd.f32 0.0, %v1169
      %v1171 = vpop.f32.mrf.mxu0
      %1172 = vmatprep.mubr.f32.mxu0 0.0
      %1173 = vmatmul.mubr.f32.gmra.mxu0 %v1095
      %v1174 = vpop.f32.mrf.mxu0
      %v1175 = vadd.f32 0.0, %v1174
      %v1176 = vpop.f32.mrf.mxu0
      %1177 = vmatprep.mubr.f32.mxu0 0.0
      %1178 = vmatmul.mubr.f32.gmra.mxu0 %v1098
      %v1179 = vpop.f32.mrf.mxu0
      %v1180 = vadd.f32 0.0, %v1179
      %v1181 = vpop.f32.mrf.mxu0
      %1182 = vmatprep.mubr.f32.mxu0 0.0
      %1183 = vmatmul.mubr.f32.gmra.mxu0 %v1101
      %v1184 = vpop.f32.mrf.mxu0
      %v1185 = vadd.f32 0.0, %v1184
      %v1186 = vpop.f32.mrf.mxu0
      %1187 = vdwg.mxu0
      %v1188 = vmul.f32 %v323, %v325
      %v1189 = vmul.f32 %v324, %v326
      %1190 = vmatprep.subr.mxu0 0.0
      %1191 = vmatpush1.msra.mxu0 0.0
      %1192 = vmatprep.subr.mxu0 0.0
      %1193 = vmatpush1.msra.mxu0 0.0
      %1194 = vmatprep.subr.mxu0 0.0
      %1195 = vmatpush1.msra.mxu0 0.0
      %1196 = vmatprep.subr.mxu0 0.0
      %1197 = vmatpush1.msra.mxu0 0.0
      %1198 = vmatprep.subr.mxu0 0.0
      %1199 = vmatpush1.msra.mxu0 0.0
      %1200 = vmatprep.subr.mxu0 0.0
      %1201 = vmatpush1.msra.mxu0 0.0
      %1202 = vmatprep.subr.mxu0 0.0
      %1203 = vmatpush1.msra.mxu0 0.0
      %1204 = vmatprep.subr.mxu0 0.0
      %1205 = vmatpush1.msra.mxu0 0.0
      %1206 = vmatprep.subr.mxu0 0.0
      %1207 = vmatpush1.msra.mxu0 0.0
      %1208 = vmatprep.subr.mxu0 0.0
      %1209 = vmatpush1.msra.mxu0 0.0
      %1210 = vmatprep.subr.mxu0 0.0
      %1211 = vmatpush1.msra.mxu0 0.0
      %1212 = vmatprep.subr.mxu0 0.0
      %1213 = vmatpush1.msra.mxu0 0.0
      %1214 = vmatprep.subr.mxu0 0.0
      %1215 = vmatpush1.msra.mxu0 0.0
      %1216 = vmatprep.subr.mxu0 0.0
      %1217 = vmatpush1.msra.mxu0 0.0
      %1218 = vmatprep.subr.mxu0 0.0
      %1219 = vmatpush1.msra.mxu0 %v1189
      %1220 = vmatprep.subr.mxu0 0.0
      %1221 = vmatpush1.msra.mxu0 %v1188
      %1222 = vmatprep.subr.mxu0 0.0
      %1223 = vmatpush2.msra.mxu0 0.0
      %1224 = vmatprep.subr.mxu0 0.0
      %1225 = vmatpush2.msra.mxu0 0.0
      %1226 = vmatprep.subr.mxu0 0.0
      %1227 = vmatpush2.msra.mxu0 0.0
      %1228 = vmatprep.subr.mxu0 0.0
      %1229 = vmatpush2.msra.mxu0 0.0
      %1230 = vmatprep.subr.mxu0 0.0
      %1231 = vmatpush2.msra.mxu0 0.0
      %1232 = vmatprep.subr.mxu0 0.0
      %1233 = vmatpush2.msra.mxu0 0.0
      %1234 = vmatprep.subr.mxu0 0.0
      %1235 = vmatpush2.msra.mxu0 0.0
      %1236 = vmatprep.subr.mxu0 0.0
      %1237 = vmatpush2.msra.mxu0 0.0
      %1238 = vmatprep.subr.mxu0 0.0
      %1239 = vmatpush2.msra.mxu0 0.0
      %1240 = vmatprep.subr.mxu0 0.0
      %1241 = vmatpush2.msra.mxu0 0.0
      %1242 = vmatprep.subr.mxu0 0.0
      %1243 = vmatpush2.msra.mxu0 0.0
      %1244 = vmatprep.subr.mxu0 0.0
      %1245 = vmatpush2.msra.mxu0 0.0
      %1246 = vmatprep.subr.mxu0 0.0
      %1247 = vmatpush2.msra.mxu0 0.0
      %1248 = vmatprep.subr.mxu0 0.0
      %1249 = vmatpush2.msra.mxu0 0.0
      %1250 = vmatprep.subr.mxu0 0.0
      %1251 = vmatpush2.msra.mxu0 0.0
      %1252 = vmatprep.subr.mxu0 0.0
      %1253 = vmatpush2.msra.mxu0 0.0
      %1254 = vmatprep.mubr.f32.mxu0 0.0
      %1255 = vmatmul.mubr.f32.gmra.mxu0 %v1092
      %v1256 = vpop.f32.mrf.mxu0
      %v1257 = vadd.f32 0.0, %v1256
      %v1258 = vpop.f32.mrf.mxu0
      %1259 = vmatprep.mubr.f32.mxu0 0.0
      %1260 = vmatmul.mubr.f32.gmra.mxu0 %v1095
      %v1261 = vpop.f32.mrf.mxu0
      %v1262 = vadd.f32 0.0, %v1261
      %v1263 = vpop.f32.mrf.mxu0
      %1264 = vmatprep.mubr.f32.mxu0 0.0
      %1265 = vmatmul.mubr.f32.gmra.mxu0 %v1098
      %v1266 = vpop.f32.mrf.mxu0
      %v1267 = vadd.f32 0.0, %v1266
      %v1268 = vpop.f32.mrf.mxu0
      %1269 = vmatprep.mubr.f32.mxu0 0.0
      %1270 = vmatmul.mubr.f32.gmra.mxu0 %v1101
      %v1271 = vpop.f32.mrf.mxu0
      %v1272 = vadd.f32 0.0, %v1271
      %v1273 = vpop.f32.mrf.mxu0
      %1274 = vdwg.mxu0
      %v1275 = vmul.f32 %v733, %v1170
      %v1276 = vmul.f32 %v734, %v1175
      %v1277 = vmul.f32 %v735, %v1180
      %v1278 = vmul.f32 %v736, %v1185
      %v1279 = vmul.f32 %v1275, %v1275
      %v1280 = vmul.f32 %v1276, %v1276
      %v1281 = vmul.f32 %v1277, %v1277
      %v1282 = vmul.f32 %v1278, %v1278
      %v1283 = vsel %vm343, %v1279, 0.0
      %1284 = vadd.xlane.f32.xlu0 %v1283
      %v1285 = vpop.xlane.xlu0 %1284
      %v1286 = vsel %vm343, %v1280, 0.0
      %1287 = vadd.xlane.f32.xlu0 %v1286
      %v1288 = vpop.xlane.xlu0 %1287
      %v1289 = vsel %vm343, %v1281, 0.0
      %1290 = vadd.xlane.f32.xlu0 %v1289
      %v1291 = vpop.xlane.xlu0 %1290
      %v1292 = vsel %vm343, %v1282, 0.0
      %1293 = vadd.xlane.f32.xlu0 %v1292
      %v1294 = vpop.xlane.xlu0 %1293
      %v1295 = vadd.f32 %v1285, %v1288
      %v1296 = vrot.slane %v1295, 4
      %v1297 = vadd.f32 %v1295, %v1296
      %v1298 = vrot.slane %v1297, 2
      %v1299 = vadd.f32 %v1297, %v1298
      %v1300 = vrot.slane %v1299, 1
      %v1301 = vadd.f32 %v1299, %v1300
      %v1302 = vadd.f32 %v1291, %v1294
      %v1303 = vrot.slane %v1302, 4
      %v1304 = vadd.f32 %v1302, %v1303
      %v1305 = vrot.slane %v1304, 2
      %v1306 = vadd.f32 %v1304, %v1305
      %v1307 = vrot.slane %v1306, 1
      %v1308 = vadd.f32 %v1306, %v1307
      %v1309 = vadd.f32 %v1301, 1e-05
      %v1310 = vadd.f32 %v1308, 1e-05
      %v1311 = vrsqrt.pop %v1309
      %v1312 = vrsqrt.pop %v1310
      %v1313 = vmul.f32 %v1275, %v1311
      %v1314 = vmul.f32 %v1276, %v1311
      %v1315 = vmul.f32 %v1277, %v1312
      %v1316 = vmul.f32 %v1278, %v1312
      %v1317 = vadd.f32 %v733, %v1257
      %v1318 = vadd.f32 %v734, %v1262
      %v1319 = vadd.f32 %v735, %v1267
      %v1320 = vadd.f32 %v736, %v1272
      %v1321 = vmul.f32 %v1317, %v1317
      %v1322 = vmul.f32 %v1318, %v1318
      %v1323 = vmul.f32 %v1319, %v1319
      %v1324 = vmul.f32 %v1320, %v1320
      %v1325 = vsel %vm343, %v1321, 0.0
      %1326 = vadd.xlane.f32.xlu0 %v1325
      %v1327 = vpop.xlane.xlu0 %1326
      %v1328 = vsel %vm343, %v1322, 0.0
      %1329 = vadd.xlane.f32.xlu0 %v1328
      %v1330 = vpop.xlane.xlu0 %1329
      %v1331 = vsel %vm343, %v1323, 0.0
      %1332 = vadd.xlane.f32.xlu0 %v1331
      %v1333 = vpop.xlane.xlu0 %1332
      %v1334 = vsel %vm343, %v1324, 0.0
      %1335 = vadd.xlane.f32.xlu0 %v1334
      %v1336 = vpop.xlane.xlu0 %1335
      %v1337 = vadd.f32 %v1327, %v1330
      %v1338 = vrot.slane %v1337, 4
      %v1339 = vadd.f32 %v1337, %v1338
      %v1340 = vrot.slane %v1339, 2
      %v1341 = vadd.f32 %v1339, %v1340
      %v1342 = vrot.slane %v1341, 1
      %v1343 = vadd.f32 %v1341, %v1342
      %v1344 = vadd.f32 %v1333, %v1336
      %v1345 = vrot.slane %v1344, 4
      %v1346 = vadd.f32 %v1344, %v1345
      %v1347 = vrot.slane %v1346, 2
      %v1348 = vadd.f32 %v1346, %v1347
      %v1349 = vrot.slane %v1348, 1
      %v1350 = vadd.f32 %v1348, %v1349
      %v1351 = vadd.f32 %v1343, 1e-05
      %v1352 = vadd.f32 %v1350, 1e-05
      %v1353 = vrsqrt.pop %v1351
      %v1354 = vrsqrt.pop %v1352
      %v1355 = vmul.f32 %v1317, %v1353
      %v1356 = vmul.f32 %v1318, %v1353
      %v1357 = vmul.f32 %v1319, %v1354
      %v1358 = vmul.f32 %v1320, %v1354
      %v1359 = vadd.f32 %v1313, %v1355
      %v1360 = vadd.f32 %v1314, %v1356
      %v1361 = vadd.f32 %v1315, %v1357
      %v1362 = vadd.f32 %v1316, %v1358
      %v1363 = vmul.f32 %v1359, %v1359
      %v1364 = vmul.f32 %v1360, %v1360
      %v1365 = vmul.f32 %v1361, %v1361
      %v1366 = vmul.f32 %v1362, %v1362
      %v1367 = vsel %vm343, %v1363, 0.0
      %1368 = vadd.xlane.f32.xlu0 %v1367
      %v1369 = vpop.xlane.xlu0 %1368
      %v1370 = vsel %vm343, %v1364, 0.0
      %1371 = vadd.xlane.f32.xlu0 %v1370
      %v1372 = vpop.xlane.xlu0 %1371
      %v1373 = vsel %vm343, %v1365, 0.0
      %1374 = vadd.xlane.f32.xlu0 %v1373
      %v1375 = vpop.xlane.xlu0 %1374
      %v1376 = vsel %vm343, %v1366, 0.0
      %1377 = vadd.xlane.f32.xlu0 %v1376
      %v1378 = vpop.xlane.xlu0 %1377
      %v1379 = vadd.f32 %v1369, %v1372
      %v1380 = vrot.slane %v1379, 4
      %v1381 = vadd.f32 %v1379, %v1380
      %v1382 = vrot.slane %v1381, 2
      %v1383 = vadd.f32 %v1381, %v1382
      %v1384 = vrot.slane %v1383, 1
      %v1385 = vadd.f32 %v1383, %v1384
      %v1386 = vadd.f32 %v1375, %v1378
      %v1387 = vrot.slane %v1386, 4
      %v1388 = vadd.f32 %v1386, %v1387
      %v1389 = vrot.slane %v1388, 2
      %v1390 = vadd.f32 %v1388, %v1389
      %v1391 = vrot.slane %v1390, 1
      %v1392 = vadd.f32 %v1390, %v1391
      %v1393 = vadd.f32 %v1385, 1e-05
      %v1394 = vadd.f32 %v1392, 1e-05
      %v1395 = vrsqrt.pop %v1393
      %v1396 = vrsqrt.pop %v1394
      %v1397 = vmul.f32 %v1359, %v1395
      %v1398 = vmul.f32 %v1360, %v1395
      %v1399 = vmul.f32 %v1361, %v1396
      %v1400 = vmul.f32 %v1362, %v1396
      %1401 = vst.msk [vmem:[%s318] sm:$0xff] %vm343, %v1397
      %1402 = vst.msk [vmem:[%s318 + $0x8] sm:$0xff] %vm343, %v1398
      %1403 = vst.msk [vmem:[%s318 + $0x10] sm:$0xff] %vm343, %v1399
      %1404 = vst.msk [vmem:[%s318 + $0x18] sm:$0xff] %vm343, %v1400
      %p1405 = scmp.lt.s32.totalorder %s18, 1
      %s1406 = scalar_select %p1405, %s18, 1
      %s1407 = smul.addr %s1406, 4
      %s1408 = smul.addr %s1407, 8
      %s1409 = scalar_lea.vmem %s7, %s1408
      // Predicated region
      $region49: #{_lambda_.1} parent=47 // pred_check
        %p1410 = pneg %p198
      $region50: #{_lambda_.1} parent=47 // pred_check_branch
        %1412 = sbr.rel (%p1410) target = $region52
      $region51: #{_lambda_.1} parent=47 // pred_region
        _
      $region52: #{_lambda_.1} parent=47 // pred_fallthru
        _
    $region48: #{_lambda_.1} parent=5 // pred_fallthru
      _
    %p1413 = scmp.le.s32.totalorder 2, %s13
    // Predicated region
    $region53: #{_lambda_.1} parent=5 // pred_check
      %p1414 = pneg %p1413
    $region54: #{_lambda_.1} parent=5 // pred_check_branch
      %1416 = sbr.rel (%p1414) target = $region56
    $region55: #{_lambda_.1} parent=5 // pred_region
      %s1417 = ssub.s32 %s13, 2
      // Predicated region
      $region57: #{_lambda_.1} parent=55 // pred_check
        %p1418 = pneg %p204
      $region58: #{_lambda_.1} parent=55 // pred_check_branch
        %1420 = sbr.rel (%p1418) target = $region60
      $region59: #{_lambda_.1} parent=55 // pred_region
        %p1421 = scmp.lt.s32.totalorder %s19, 1
        %s1422 = scalar_select %p1421, %s19, 1
        %s1423 = smul.addr %s1422, 4
        %s1424 = smul.addr %s1423, 8
        %s1425 = scalar_lea.vmem %s7, %s1424
      $region60: #{_lambda_.1} parent=55 // pred_fallthru
        _
    $region56: #{_lambda_.1} parent=5 // pred_fallthru
      _
  $region6: #{_lambda_.1} parent=0 // loop_footer
    %s17 = sadd.s32 1, %s13
  $region7: #{_lambda_.1} parent=0 // loop_footer_branch
    %12 = sbr.rel target = $region3
  $region8: #{_lambda_.1} parent=0 // loop_exit
    _

</llo_original>
